<compile_context>
chip_gen: v5e
topology: v5e:2x2
jax: 0.10.0
libtpu: 0.0.40
codegen_flags: <defaults>
</compile_context>

<pallas_src>
import math

import numpy as np
import jax
import jax.numpy as jnp
from jax import lax
from jax.experimental import pallas as pl
from jax.experimental.pallas import tpu as pltpu


# ---------------------------------------------------------------------------
# Shape bookkeeping (same formulas as the PyTorch module)
# ---------------------------------------------------------------------------

def out_dim_conv(in_dim, padding, dilation, kernel_size, stride):
    return math.floor((in_dim + 2 * padding - dilation * (kernel_size - 1) - 1)
                      / stride + 1)


def out_dim_pool(in_dim, kernel_size):
    return math.floor((in_dim - (kernel_size - 1) - 1) / kernel_size + 1)


def _round_up(v, m):
    return ((v + m - 1) // m) * m


def conv_layer_dims(hyper):
    """Static per-conv-layer dimensions used to build the fused kernel."""
    dims = []
    H, W = hyper["H_in"], hyper["W_in"]
    cin = 3
    for i in range(hyper["nb_conv_layers"]):
        k = hyper["kernel_size"][i]
        s = hyper["stride"][i]
        p = hyper["padding"][i]
        pk = hyper["pool_kernel_size"][i]
        cout = hyper["channel_out"][i]
        # TODO(synk): fused builder is specialised to stride=1 / "same" conv /
        # pool=2 (the module's config); other values need a generalised window.
        assert s == 1 and pk == 2 and 2 * p == k - 1, \
            "fused kernel assumes stride=1, 'same' conv, pool=2"
        Hc = out_dim_conv(H, p, 1, k, s)
        Wc = out_dim_conv(W, p, 1, k, s)
        assert Hc == H and Wc == W and Hc % 2 == 0
        Hp = out_dim_pool(Hc, pk)
        Wp = out_dim_pool(Wc, pk)
        dims.append(dict(cin=cin, cout=cout, k=k, pad=p,
                         H_in=H, W_in=W, Hc=Hc, Wc=Wc, Hp=Hp, Wp=Wp))
        H, W, cin = Hp, Wp, cout
    return dims


def block_rows_per_image(dims):
    """Per-image row block S_l of the flat (batch*S_l, lanes) activation
    layout.  Pooling halves rows, so S_{l+1} = S_l / 2 exactly, and each S_l
    must hold pad + H_in + pad rows (extra rows per image are junk rows whose
    conv outputs are computed but ignored)."""
    n = len(dims)
    s_last = 0
    for l, d in enumerate(dims):
        need = d["H_in"] + 2 * d["pad"]
        s_last = max(s_last, math.ceil(need / (2 ** (n - 1 - l))))
    if s_last % 2:
        s_last += 1
    return [s_last * (2 ** (n - 1 - l)) for l in range(n)]


# ---------------------------------------------------------------------------
# Weight folding (ONCE at init, on host).
#
# Activation layout inside the kernel (flat over the batch tile):
#   conv-layer-l input : (B_TILE*S_l, W_l*Cin_l) f32, per-image block of S_l
#                        rows = [pad zeros | H_in data rows | pad zeros | junk]
#   conv-layer-l output: (B_TILE*S_l - (k-1), 2*Wp*Cout) lane layout
#                        [ even-wo half | odd-wo half ], lane = wp*Cout + co,
#                        so the 2x2 max-pool = max over {2 rows}x{2 lane halves}
# The 3x3 W-window, W padding and channel mixing are folded into banded
# per-dy weight matrices; H padding is handled by the per-image zero pad rows.
# ---------------------------------------------------------------------------

def fold_params(torch_w, dims, lin_size, n_out=2, n_out_pad=128):
    params = {"conv": []}
    for i, d in enumerate(dims):
        w = np.asarray(torch_w["conv"][i][0], np.float32)   # (cout, cin, k, k)
        b = np.asarray(torch_w["conv"][i][1], np.float32)   # (cout,)
        cin, cout, k, p = d["cin"], d["cout"], d["k"], d["pad"]
        W_in, Wp = d["W_in"], d["Wp"]
        half = Wp * cout
        L = 2 * half                                          # lane-dense width
        kdim = W_in * cin
        if i == 0:
            kdim = _round_up(kdim, 128)      # lane-pad layer-0 input -> unmasked vld
        wf = np.zeros((k, kdim, L), np.float32)
        for wo in range(2 * Wp):             # orphan odd Wc column dropped by pool
            h_off = 0 if wo % 2 == 0 else half
            for co in range(cout):
                lane = h_off + (wo // 2) * cout + co
                for dx in range(k):
                    w_src = wo + dx - p
                    if 0 <= w_src < W_in:
                        for ci in range(cin):
                            wf[:, w_src * cin + ci, lane] = w[co, ci, :, dx]
        bh = np.zeros((1, half), np.float32)                  # per pooled lane bias
        for wp_ in range(Wp):
            for co in range(cout):
                bh[0, wp_ * cout + co] = b[co]
        params["conv"].append((jnp.asarray(wf, jnp.bfloat16),
                               jnp.asarray(bh, jnp.float32)))

    # fc1: fold the NCHW .view(batch,-1) permutation of PyTorch flattening.
    d = dims[-1]
    Hp, Wp, C = d["Hp"], d["Wp"], d["cout"]
    w1 = np.asarray(torch_w["fc1"][0], np.float32)            # (lin, Hp*Wp*C)
    m1 = np.zeros((Hp, Wp * C, lin_size), np.float32)
    for hp in range(Hp):
        for wp_ in range(Wp):
            for c in range(C):
                m1[hp, wp_ * C + c, :] = w1[:, c * Hp * Wp + hp * Wp + wp_]
    params["fc1"] = (jnp.asarray(m1, jnp.bfloat16),
                     jnp.asarray(np.asarray(torch_w["fc1"][1]).reshape(1, -1),
                                 jnp.float32))
    params["fc2"] = (jnp.asarray(np.asarray(torch_w["fc2"][0]).T, jnp.bfloat16),
                     jnp.asarray(np.asarray(torch_w["fc2"][1]).reshape(1, -1),
                                 jnp.float32))
    w3 = np.zeros((lin_size, n_out_pad), np.float32)          # pad logits to 128 lanes
    w3[:, :n_out] = np.asarray(torch_w["fc3"][0], np.float32).T
    b3 = np.zeros((1, n_out_pad), np.float32)
    b3[0, :n_out] = np.asarray(torch_w["fc3"][1], np.float32)
    params["fc3"] = (jnp.asarray(w3, jnp.bfloat16), jnp.asarray(b3, jnp.float32))
    return params


# ---------------------------------------------------------------------------
# The fused kernel
# ---------------------------------------------------------------------------

def make_kernel(dims, S, lin_size, bt):
    n_conv = len(dims)

    def kernel(*refs):
        i = 0
        x_ref = refs[i]; i += 1                            # (bt*S0, lane0) f32
        conv_refs = refs[i:i + 2 * n_conv]; i += 2 * n_conv
        mask_refs = refs[i:i + n_conv - 1]; i += n_conv - 1
        (m1_ref, fb1_ref, m2_ref, fb2_ref,
         m3_ref, fb3_ref) = refs[i:i + 6]; i += 6
        o_ref = refs[i]; i += 1                            # (bt, 128)
        cs_ref = refs[i]; i += 1                           # conv-out staging
        pin_refs = refs[i:i + n_conv - 1]; i += n_conv - 1 # inputs for layers>=1
        ps_ref = refs[i]                                   # last pooled staging

        for li, d in enumerate(dims):
            wf_ref, bh_ref = conv_refs[2 * li], conv_refs[2 * li + 1]
            k, Hp, Wp, cout = d["k"], d["Hp"], d["Wp"], d["cout"]
            half = Wp * cout
            L = 2 * half
            Sl = S[li]
            Mc = bt * Sl - (k - 1)        # conv rows computed (valid + junk rows)
            Mp = Mc // 2                  # pooled rows
            last = li == n_conv - 1
            zin = x_ref if li == 0 else pin_refs[li - 1]

            # conv: k row-shifted banded MXU matmuls, M = bt*Sl-(k-1), N = L=128
            for dy in range(k):
                lhs = zin[pl.ds(dy, Mc), :].astype(jnp.bfloat16)
                part = jnp.dot(lhs, wf_ref[dy],
                               preferred_element_type=jnp.float32)
                if dy == 0:
                    cs_ref[pl.ds(0, Mc), pl.ds(0, L)] = part
                else:
                    cs_ref[pl.ds(0, Mc), pl.ds(0, L)] += part

            # 2x2 max-pool: max over {even,odd rows} x {even,odd-wo lane halves},
            # then per-channel bias + relu (both commute with the max).
            ev = cs_ref[pl.ds(0, Mp, stride=2), pl.ds(0, L)]
            od = cs_ref[pl.ds(1, Mp, stride=2), pl.ds(0, L)]
            m4 = jnp.maximum(jnp.maximum(ev[:, :half], ev[:, half:]),
                             jnp.maximum(od[:, :half], od[:, half:]))
            pooled = jnp.maximum(m4 + bh_ref[...], 0.0)        # (Mp, half)

            if not last:
                # junk pooled rows land exactly on the next layer's zero-pad
                # rows -> zero them with the precomputed 0/1 row mask, then
                # ONE slab store into the next layer's padded input buffer.
                pooled = pooled * mask_refs[li][pl.ds(0, Mp), :]
                nxt = pin_refs[li]
                nxt[pl.ds(0, 1), :] = jnp.zeros((1, half), jnp.float32)
                nxt[pl.ds(1, Mp), :] = pooled
            else:
                # flatten (per image) + fc stack, all with M = bt on the MXU.
                ps_ref[pl.ds(0, Mp), :] = pooled
                sn = Sl // 2
                accf = jnp.zeros((bt, lin_size), jnp.float32)
                for hp in range(Hp):
                    rows = ps_ref[pl.ds(hp, bt, stride=sn), :].astype(jnp.bfloat16)
                    accf = accf + jnp.dot(rows, m1_ref[hp],
                                          preferred_element_type=jnp.float32)
                h = jnp.maximum(accf + fb1_ref[...], 0.0)
                h = jnp.maximum(
                    jnp.dot(h.astype(jnp.bfloat16), m2_ref[...],
                            preferred_element_type=jnp.float32) + fb2_ref[...],
                    0.0)
                o_ref[...] = (jnp.dot(h.astype(jnp.bfloat16), m3_ref[...],
                                      preferred_element_type=jnp.float32)
                              + fb3_ref[...])

    return kernel


def build_forward(folded, dims, S, lin_size, n_out=2, n_out_pad=128, b_tile=None):
    n_conv = len(dims)
    d0 = dims[0]
    lane0 = _round_up(d0["W_in"] * d0["cin"], 128)
    max_L = max(2 * d["Wp"] * d["cout"] for d in dims)

    conv_w = []
    for wf, bh in folded["conv"]:
        conv_w += [wf, bh]
    fc_w = [folded["fc1"][0], folded["fc1"][1],
            folded["fc2"][0], folded["fc2"][1],
            folded["fc3"][0], folded["fc3"][1]]

    def full_spec(a):
        # full-array block, constant index map -> resident in VMEM, no re-DMA
        return pl.BlockSpec(a.shape, lambda b, nd=a.ndim: (0,) * nd)

    def forward(x_nchw):
        B = x_nchw.shape[0]
        # ~16 images per grid step (M ~ 128-320 on the MXU); at least 2 grid
        # steps for realistic batches so both v7x TensorCores get tiles.
        bt = b_tile if b_tile is not None else min(16, B)
        nb = -(-B // bt) * bt
        S0 = S[0]
        H0, W0, C0, p0 = d0["H_in"], d0["W_in"], d0["cin"], d0["pad"]
        kernel = make_kernel(dims, S, lin_size, bt)

        # One-time XLA prep: NCHW -> NHWC, (W,C) merged onto lanes, zero-pad
        # batch->nb, rows->S0 per image (p0 leading pad rows), lanes->lane0.
        xz = jnp.transpose(x_nchw, (0, 2, 3, 1)).reshape(B, H0, W0 * C0)
        xz = jnp.pad(xz, ((0, nb - B),
                          (p0, S0 - H0 - p0),
                          (0, lane0 - W0 * C0)))
        xz = xz.reshape(nb * S0, lane0)

        # Static 0/1 row-validity masks for non-last layers (1 for pooled rows
        # carrying data, 0 for rows landing on the next layer's pad rows).
        masks = []
        for li in range(n_conv - 1):
            sn, hp = S[li] // 2, dims[li]["Hp"]
            m = np.zeros((bt * sn, 1), np.float32)
            for im in range(bt):
                m[im * sn:im * sn + hp, 0] = 1.0
            masks.append(jnp.asarray(m))

        in_specs = [pl.BlockSpec((bt * S0, lane0), lambda b: (b, 0))]
        in_specs += [full_spec(a) for a in conv_w]
        in_specs += [full_spec(a) for a in masks]
        in_specs += [full_spec(a) for a in fc_w]

        scratch = [pltpu.VMEM((bt * S0, max_L), jnp.float32)]
        for li in range(1, n_conv):
            scratch.append(pltpu.VMEM(
                (bt * S[li], dims[li]["W_in"] * dims[li]["cin"]), jnp.float32))
        scratch.append(pltpu.VMEM(
            (bt * (S[-1] // 2), dims[-1]["Wp"] * dims[-1]["cout"]), jnp.float32))

        out = pl.pallas_call(
            kernel,
            out_shape=jax.ShapeDtypeStruct((nb, n_out_pad), jnp.float32),
            grid=(nb // bt,),
            in_specs=in_specs,
            out_specs=pl.BlockSpec((bt, n_out_pad), lambda b: (b, 0)),
            scratch_shapes=scratch,
            compiler_params=pltpu.CompilerParams(
                dimension_semantics=("parallel",)),   # batch tiles across TCs
        )(xz, *conv_w, *masks, *fc_w)
        return out[:B, :n_out]

    return forward


# ---------------------------------------------------------------------------
# PyTorch-layout init + pure-JAX reference (numerical self-check)
# ---------------------------------------------------------------------------

def init_torch_layout_weights(key, hyper, dims, lin_size, n_out=2):
    tw = {"conv": []}
    cin = 3
    for i in range(hyper["nb_conv_layers"]):
        cout = hyper["channel_out"][i]
        k = hyper["kernel_size"][i]
        key, kw, kb = jax.random.split(key, 3)
        w = 0.1 * jax.random.normal(kw, (cout, cin, k, k), jnp.float32)
        b = 0.1 * jax.random.normal(kb, (cout,), jnp.float32)
        tw["conv"].append((w, b))
        cin = cout
    d = dims[-1]
    lin_in = d["Hp"] * d["Wp"] * d["cout"]
    for name, (din, dout) in zip(("fc1", "fc2", "fc3"),
                                 [(lin_in, lin_size), (lin_size, lin_size),
                                  (lin_size, n_out)]):
        key, kw, kb = jax.random.split(key, 3)
        w = 0.1 * jax.random.normal(kw, (dout, din), jnp.float32)   # (out, in)
        b = 0.1 * jax.random.normal(kb, (dout,), jnp.float32)
        tw[name] = (w, b)
    return tw


def reference_forward(tw, hyper, x):
    for i in range(hyper["nb_conv_layers"]):
        w, b = tw["conv"][i]
        s, p, pk = hyper["stride"][i], hyper["padding"][i], hyper["pool_kernel_size"][i]
        x = lax.conv_general_dilated(x, w, (s, s), [(p, p), (p, p)],
                                     dimension_numbers=("NCHW", "OIHW", "NCHW"))
        x = jnp.maximum(x + b[None, :, None, None], 0.0)
        B, C, H, W = x.shape
        x = x[:, :, :pk * (H // pk), :pk * (W // pk)]
        x = x.reshape(B, C, H // pk, pk, W // pk, pk).max(axis=(3, 5))
    x = x.reshape(x.shape[0], -1)
    x = jnp.maximum(x @ tw["fc1"][0].T + tw["fc1"][1], 0.0)
    x = jnp.maximum(x @ tw["fc2"][0].T + tw["fc2"][1], 0.0)
    return x @ tw["fc3"][0].T + tw["fc3"][1]


# ---------------------------------------------------------------------------
# Main
# ---------------------------------------------------------------------------

if __name__ == "__main__":
    hyper = dict(
        nb_conv_layers=2,
        channel_out=[8, 16],
        kernel_size=[3, 3],
        stride=[1, 1],
        padding=[1, 1],
        pool_kernel_size=[2, 2],
        W_in=16,
        H_in=16,
        lin_layers_size=32,
    )
    dims = conv_layer_dims(hyper)
    S = block_rows_per_image(dims)
    lin_size = hyper["lin_layers_size"]

    key = jax.random.PRNGKey(0)
    key, kinit, kx1, kx2 = jax.random.split(key, 4)
    tw = init_torch_layout_weights(kinit, hyper, dims, lin_size)
    folded = fold_params(tw, dims, lin_size)

    fwd = jax.jit(build_forward(folded, dims, S, lin_size))

    # small batch (matches the module-style example shapes)
    x = jax.random.normal(kx1, (2, 3, hyper["H_in"], hyper["W_in"]), jnp.float32)
    out = fwd(x)
    jax.block_until_ready(out)
    assert out.shape == (2, 2), out.shape
    assert out.dtype == jnp.float32
    ref = reference_forward(tw, hyper, x)
    err = float(jnp.max(jnp.abs(out - ref)))
    # bf16 weights/activations on the MXU (f32 accumulate) -> relaxed tolerance
    assert err < 1e-1, f"mismatch vs reference (B=2): max abs err = {err}"

    # larger batch exercising the batch-tiled path (b_tile=16 -> 2 parallel tiles)
    xb = jax.random.normal(kx2, (32, 3, hyper["H_in"], hyper["W_in"]), jnp.float32)
    outb = fwd(xb)
    jax.block_until_ready(outb)
    refb = reference_forward(tw, hyper, xb)
    errb = float(jnp.max(jnp.abs(outb - refb)))
    assert errb < 1e-1, f"mismatch vs reference (B=32): max abs err = {errb}"

    print("KERNEL_OK")
</pallas_src>

<mosaic_0001>
module attributes {stable_mosaic.version = 11 : i64} {
  func.func @kernel(%arg0: i32, %arg1: memref<40x128xf32, #tpu.memory_space<vmem>>, %arg2: memref<3x128x128xbf16, #tpu.memory_space<vmem>>, %arg3: memref<1x64xf32, #tpu.memory_space<vmem>>, %arg4: memref<3x64x128xbf16, #tpu.memory_space<vmem>>, %arg5: memref<1x64xf32, #tpu.memory_space<vmem>>, %arg6: memref<20x1xf32, #tpu.memory_space<vmem>>, %arg7: memref<4x64x32xbf16, #tpu.memory_space<vmem>>, %arg8: memref<1x32xf32, #tpu.memory_space<vmem>>, %arg9: memref<32x32xbf16, #tpu.memory_space<vmem>>, %arg10: memref<1x32xf32, #tpu.memory_space<vmem>>, %arg11: memref<32x128xbf16, #tpu.memory_space<vmem>>, %arg12: memref<1x128xf32, #tpu.memory_space<vmem>>, %arg13: memref<2x128xf32, #tpu.memory_space<vmem>>, %arg14: memref<40x128xf32, #tpu.memory_space<vmem>>, %arg15: memref<20x64xf32, #tpu.memory_space<vmem>>, %arg16: memref<10x64xf32, #tpu.memory_space<vmem>>) attributes {dimension_semantics = [#tpu.dimension_semantics<parallel>], iteration_bounds = array<i64: 1>, scalar_prefetch = 0 : i64, scratch_operands = 3 : i64, tpu.core_type = #tpu.core_type<tc>, window_params = [{transform_indices = @transform_0, window_bounds = array<i64: 40, 128>}, {pipeline_mode = #tpu.pipeline_mode<synchronous>, transform_indices = @transform_1, window_bounds = array<i64: 3, 128, 128>}, {pipeline_mode = #tpu.pipeline_mode<synchronous>, transform_indices = @transform_2, window_bounds = array<i64: 1, 64>}, {pipeline_mode = #tpu.pipeline_mode<synchronous>, transform_indices = @transform_3, window_bounds = array<i64: 3, 64, 128>}, {pipeline_mode = #tpu.pipeline_mode<synchronous>, transform_indices = @transform_4, window_bounds = array<i64: 1, 64>}, {pipeline_mode = #tpu.pipeline_mode<synchronous>, transform_indices = @transform_5, window_bounds = array<i64: 20, 1>}, {pipeline_mode = #tpu.pipeline_mode<synchronous>, transform_indices = @transform_6, window_bounds = array<i64: 4, 64, 32>}, {pipeline_mode = #tpu.pipeline_mode<synchronous>, transform_indices = @transform_7, window_bounds = array<i64: 1, 32>}, {pipeline_mode = #tpu.pipeline_mode<synchronous>, transform_indices = @transform_8, window_bounds = array<i64: 32, 32>}, {pipeline_mode = #tpu.pipeline_mode<synchronous>, transform_indices = @transform_9, window_bounds = array<i64: 1, 32>}, {pipeline_mode = #tpu.pipeline_mode<synchronous>, transform_indices = @transform_10, window_bounds = array<i64: 32, 128>}, {pipeline_mode = #tpu.pipeline_mode<synchronous>, transform_indices = @transform_11, window_bounds = array<i64: 1, 128>}, {transform_indices = @transform_12, window_bounds = array<i64: 2, 128>}]} {
    %c0 = arith.constant 0 : index
    %c0_0 = arith.constant 0 : index
    %0 = vector.load %arg1[%c0, %c0_0] : memref<40x128xf32, #tpu.memory_space<vmem>>, vector<38x128xf32>
    %1 = arith.truncf %0 : vector<38x128xf32> to vector<38x128xbf16>
    %c0_1 = arith.constant 0 : index
    %c0_2 = arith.constant 0 : index
    %c0_3 = arith.constant 0 : index
    %2 = vector.load %arg2[%c0_1, %c0_2, %c0_3] : memref<3x128x128xbf16, #tpu.memory_space<vmem>>, vector<1x128x128xbf16>
    %3 = vector.shape_cast %2 : vector<1x128x128xbf16> to vector<128x128xbf16>
    %cst = arith.constant dense<0.000000e+00> : vector<38x128xf32>
    %4 = tpu.matmul %1, %3, %cst {dimension_numbers = #tpu.dot_dimension_numbers<[1], [0], [0], [1], [0, 0, 1, 1], [], []>} : vector<38x128xbf16>, vector<128x128xbf16>, vector<38x128xf32> -> vector<38x128xf32>
    %c0_4 = arith.constant 0 : index
    %c0_5 = arith.constant 0 : index
    %5 = vector.load %arg14[%c0_4, %c0_5] : memref<40x128xf32, #tpu.memory_space<vmem>>, vector<38x128xf32>
    tpu.vector_store %arg14[%c0_4, %c0_5], %4 {strides = array<i32>} : memref<40x128xf32, #tpu.memory_space<vmem>>, vector<38x128xf32>,
    %c1 = arith.constant 1 : index
    %c0_6 = arith.constant 0 : index
    %6 = vector.load %arg1[%c1, %c0_6] : memref<40x128xf32, #tpu.memory_space<vmem>>, vector<38x128xf32>
    %7 = arith.truncf %6 : vector<38x128xf32> to vector<38x128xbf16>
    %c1_7 = arith.constant 1 : index
    %c0_8 = arith.constant 0 : index
    %c0_9 = arith.constant 0 : index
    %8 = vector.load %arg2[%c1_7, %c0_8, %c0_9] : memref<3x128x128xbf16, #tpu.memory_space<vmem>>, vector<1x128x128xbf16>
    %9 = vector.shape_cast %8 : vector<1x128x128xbf16> to vector<128x128xbf16>
    %cst_10 = arith.constant dense<0.000000e+00> : vector<38x128xf32>
    %10 = tpu.matmul %7, %9, %cst_10 {dimension_numbers = #tpu.dot_dimension_numbers<[1], [0], [0], [1], [0, 0, 1, 1], [], []>} : vector<38x128xbf16>, vector<128x128xbf16>, vector<38x128xf32> -> vector<38x128xf32>
    %c0_11 = arith.constant 0 : index
    %c0_12 = arith.constant 0 : index
    %11 = vector.load %arg14[%c0_11, %c0_12] : memref<40x128xf32, #tpu.memory_space<vmem>>, vector<38x128xf32>
    %12 = arith.addf %11, %10 : vector<38x128xf32>
    %c0_13 = arith.constant 0 : index
    %c0_14 = arith.constant 0 : index
    %13 = vector.load %arg14[%c0_13, %c0_14] : memref<40x128xf32, #tpu.memory_space<vmem>>, vector<38x128xf32>
    tpu.vector_store %arg14[%c0_13, %c0_14], %12 {strides = array<i32>} : memref<40x128xf32, #tpu.memory_space<vmem>>, vector<38x128xf32>,
    %c2 = arith.constant 2 : index
    %c0_15 = arith.constant 0 : index
    %14 = vector.load %arg1[%c2, %c0_15] : memref<40x128xf32, #tpu.memory_space<vmem>>, vector<38x128xf32>
    %15 = arith.truncf %14 : vector<38x128xf32> to vector<38x128xbf16>
    %c2_16 = arith.constant 2 : index
    %c0_17 = arith.constant 0 : index
    %c0_18 = arith.constant 0 : index
    %16 = vector.load %arg2[%c2_16, %c0_17, %c0_18] : memref<3x128x128xbf16, #tpu.memory_space<vmem>>, vector<1x128x128xbf16>
    %17 = vector.shape_cast %16 : vector<1x128x128xbf16> to vector<128x128xbf16>
    %cst_19 = arith.constant dense<0.000000e+00> : vector<38x128xf32>
    %18 = tpu.matmul %15, %17, %cst_19 {dimension_numbers = #tpu.dot_dimension_numbers<[1], [0], [0], [1], [0, 0, 1, 1], [], []>} : vector<38x128xbf16>, vector<128x128xbf16>, vector<38x128xf32> -> vector<38x128xf32>
    %c0_20 = arith.constant 0 : index
    %c0_21 = arith.constant 0 : index
    %19 = vector.load %arg14[%c0_20, %c0_21] : memref<40x128xf32, #tpu.memory_space<vmem>>, vector<38x128xf32>
    %20 = arith.addf %19, %18 : vector<38x128xf32>
    %c0_22 = arith.constant 0 : index
    %c0_23 = arith.constant 0 : index
    %21 = vector.load %arg14[%c0_22, %c0_23] : memref<40x128xf32, #tpu.memory_space<vmem>>, vector<38x128xf32>
    tpu.vector_store %arg14[%c0_22, %c0_23], %20 {strides = array<i32>} : memref<40x128xf32, #tpu.memory_space<vmem>>, vector<38x128xf32>,
    %c0_24 = arith.constant 0 : index
    %c0_25 = arith.constant 0 : index
    %22 = tpu.strided_load %arg14[%c0_24, %c0_25] {strides = array<i32: 2, 1>} : memref<40x128xf32, #tpu.memory_space<vmem>>, vector<19x128xf32>
    %c1_26 = arith.constant 1 : index
    %c0_27 = arith.constant 0 : index
    %23 = tpu.strided_load %arg14[%c1_26, %c0_27] {strides = array<i32: 2, 1>} : memref<40x128xf32, #tpu.memory_space<vmem>>, vector<19x128xf32>
    %24 = vector.extract_strided_slice %22 {offsets = [0, 0], sizes = [19, 64], strides = [1, 1]} : vector<19x128xf32> to vector<19x64xf32>
    %25 = vector.extract_strided_slice %22 {offsets = [0, 64], sizes = [19, 64], strides = [1, 1]} : vector<19x128xf32> to vector<19x64xf32>
    %26 = arith.maximumf %24, %25 : vector<19x64xf32>
    %27 = vector.extract_strided_slice %23 {offsets = [0, 0], sizes = [19, 64], strides = [1, 1]} : vector<19x128xf32> to vector<19x64xf32>
    %28 = vector.extract_strided_slice %23 {offsets = [0, 64], sizes = [19, 64], strides = [1, 1]} : vector<19x128xf32> to vector<19x64xf32>
    %29 = arith.maximumf %27, %28 : vector<19x64xf32>
    %30 = arith.maximumf %26, %29 : vector<19x64xf32>
    %c0_28 = arith.constant 0 : index
    %c0_29 = arith.constant 0 : index
    %31 = vector.load %arg3[%c0_28, %c0_29] : memref<1x64xf32, #tpu.memory_space<vmem>>, vector<1x64xf32>
    %32 = vector.broadcast %31 : vector<1x64xf32> to vector<19x64xf32>
    %33 = arith.addf %30, %32 : vector<19x64xf32>
    %cst_30 = arith.constant 0.000000e+00 : f32
    %34 = vector.broadcast %cst_30 : f32 to vector<19x64xf32>
    %35 = arith.maximumf %33, %34 : vector<19x64xf32>
    %c0_31 = arith.constant 0 : index
    %c0_32 = arith.constant 0 : index
    %36 = vector.load %arg6[%c0_31, %c0_32] : memref<20x1xf32, #tpu.memory_space<vmem>>, vector<19x1xf32>
    %37 = vector.broadcast %36 : vector<19x1xf32> to vector<19x64xf32>
    %38 = arith.mulf %35, %37 : vector<19x64xf32>
    %cst_33 = arith.constant 0.000000e+00 : f32
    %39 = vector.broadcast %cst_33 : f32 to vector<1x64xf32>
    %c0_34 = arith.constant 0 : index
    %c0_35 = arith.constant 0 : index
    %40 = vector.load %arg15[%c0_34, %c0_35] : memref<20x64xf32, #tpu.memory_space<vmem>>, vector<1x64xf32>
    tpu.vector_store %arg15[%c0_34, %c0_35], %39 {strides = array<i32>} : memref<20x64xf32, #tpu.memory_space<vmem>>, vector<1x64xf32>,
    %c1_36 = arith.constant 1 : index
    %c0_37 = arith.constant 0 : index
    %41 = vector.load %arg15[%c1_36, %c0_37] : memref<20x64xf32, #tpu.memory_space<vmem>>, vector<19x64xf32>
    tpu.vector_store %arg15[%c1_36, %c0_37], %38 {strides = array<i32>} : memref<20x64xf32, #tpu.memory_space<vmem>>, vector<19x64xf32>,
    %c0_38 = arith.constant 0 : index
    %c0_39 = arith.constant 0 : index
    %42 = vector.load %arg15[%c0_38, %c0_39] : memref<20x64xf32, #tpu.memory_space<vmem>>, vector<18x64xf32>
    %43 = arith.truncf %42 : vector<18x64xf32> to vector<18x64xbf16>
    %c0_40 = arith.constant 0 : index
    %c0_41 = arith.constant 0 : index
    %c0_42 = arith.constant 0 : index
    %44 = vector.load %arg4[%c0_40, %c0_41, %c0_42] : memref<3x64x128xbf16, #tpu.memory_space<vmem>>, vector<1x64x128xbf16>
    %45 = vector.shape_cast %44 : vector<1x64x128xbf16> to vector<64x128xbf16>
    %cst_43 = arith.constant dense<0.000000e+00> : vector<18x128xf32>
    %46 = tpu.matmul %43, %45, %cst_43 {dimension_numbers = #tpu.dot_dimension_numbers<[1], [0], [0], [1], [0, 0, 1, 1], [], []>} : vector<18x64xbf16>, vector<64x128xbf16>, vector<18x128xf32> -> vector<18x128xf32>
    %c0_44 = arith.constant 0 : index
    %c0_45 = arith.constant 0 : index
    %47 = vector.load %arg14[%c0_44, %c0_45] : memref<40x128xf32, #tpu.memory_space<vmem>>, vector<18x128xf32>
    tpu.vector_store %arg14[%c0_44, %c0_45], %46 {strides = array<i32>} : memref<40x128xf32, #tpu.memory_space<vmem>>, vector<18x128xf32>,
    %c1_46 = arith.constant 1 : index
    %c0_47 = arith.constant 0 : index
    %48 = vector.load %arg15[%c1_46, %c0_47] : memref<20x64xf32, #tpu.memory_space<vmem>>, vector<18x64xf32>
    %49 = arith.truncf %48 : vector<18x64xf32> to vector<18x64xbf16>
    %c1_48 = arith.constant 1 : index
    %c0_49 = arith.constant 0 : index
    %c0_50 = arith.constant 0 : index
    %50 = vector.load %arg4[%c1_48, %c0_49, %c0_50] : memref<3x64x128xbf16, #tpu.memory_space<vmem>>, vector<1x64x128xbf16>
    %51 = vector.shape_cast %50 : vector<1x64x128xbf16> to vector<64x128xbf16>
    %cst_51 = arith.constant dense<0.000000e+00> : vector<18x128xf32>
    %52 = tpu.matmul %49, %51, %cst_51 {dimension_numbers = #tpu.dot_dimension_numbers<[1], [0], [0], [1], [0, 0, 1, 1], [], []>} : vector<18x64xbf16>, vector<64x128xbf16>, vector<18x128xf32> -> vector<18x128xf32>
    %c0_52 = arith.constant 0 : index
    %c0_53 = arith.constant 0 : index
    %53 = vector.load %arg14[%c0_52, %c0_53] : memref<40x128xf32, #tpu.memory_space<vmem>>, vector<18x128xf32>
    %54 = arith.addf %53, %52 : vector<18x128xf32>
    %c0_54 = arith.constant 0 : index
    %c0_55 = arith.constant 0 : index
    %55 = vector.load %arg14[%c0_54, %c0_55] : memref<40x128xf32, #tpu.memory_space<vmem>>, vector<18x128xf32>
    tpu.vector_store %arg14[%c0_54, %c0_55], %54 {strides = array<i32>} : memref<40x128xf32, #tpu.memory_space<vmem>>, vector<18x128xf32>,
    %c2_56 = arith.constant 2 : index
    %c0_57 = arith.constant 0 : index
    %56 = vector.load %arg15[%c2_56, %c0_57] : memref<20x64xf32, #tpu.memory_space<vmem>>, vector<18x64xf32>
    %57 = arith.truncf %56 : vector<18x64xf32> to vector<18x64xbf16>
    %c2_58 = arith.constant 2 : index
    %c0_59 = arith.constant 0 : index
    %c0_60 = arith.constant 0 : index
    %58 = vector.load %arg4[%c2_58, %c0_59, %c0_60] : memref<3x64x128xbf16, #tpu.memory_space<vmem>>, vector<1x64x128xbf16>
    %59 = vector.shape_cast %58 : vector<1x64x128xbf16> to vector<64x128xbf16>
    %cst_61 = arith.constant dense<0.000000e+00> : vector<18x128xf32>
    %60 = tpu.matmul %57, %59, %cst_61 {dimension_numbers = #tpu.dot_dimension_numbers<[1], [0], [0], [1], [0, 0, 1, 1], [], []>} : vector<18x64xbf16>, vector<64x128xbf16>, vector<18x128xf32> -> vector<18x128xf32>
    %c0_62 = arith.constant 0 : index
    %c0_63 = arith.constant 0 : index
    %61 = vector.load %arg14[%c0_62, %c0_63] : memref<40x128xf32, #tpu.memory_space<vmem>>, vector<18x128xf32>
    %62 = arith.addf %61, %60 : vector<18x128xf32>
    %c0_64 = arith.constant 0 : index
    %c0_65 = arith.constant 0 : index
    %63 = vector.load %arg14[%c0_64, %c0_65] : memref<40x128xf32, #tpu.memory_space<vmem>>, vector<18x128xf32>
    tpu.vector_store %arg14[%c0_64, %c0_65], %62 {strides = array<i32>} : memref<40x128xf32, #tpu.memory_space<vmem>>, vector<18x128xf32>,
    %c0_66 = arith.constant 0 : index
    %c0_67 = arith.constant 0 : index
    %64 = tpu.strided_load %arg14[%c0_66, %c0_67] {strides = array<i32: 2, 1>} : memref<40x128xf32, #tpu.memory_space<vmem>>, vector<9x128xf32>
    %c1_68 = arith.constant 1 : index
    %c0_69 = arith.constant 0 : index
    %65 = tpu.strided_load %arg14[%c1_68, %c0_69] {strides = array<i32: 2, 1>} : memref<40x128xf32, #tpu.memory_space<vmem>>, vector<9x128xf32>
    %66 = vector.extract_strided_slice %64 {offsets = [0, 0], sizes = [9, 64], strides = [1, 1]} : vector<9x128xf32> to vector<9x64xf32>
    %67 = vector.extract_strided_slice %64 {offsets = [0, 64], sizes = [9, 64], strides = [1, 1]} : vector<9x128xf32> to vector<9x64xf32>
    %68 = arith.maximumf %66, %67 : vector<9x64xf32>
    %69 = vector.extract_strided_slice %65 {offsets = [0, 0], sizes = [9, 64], strides = [1, 1]} : vector<9x128xf32> to vector<9x64xf32>
    %70 = vector.extract_strided_slice %65 {offsets = [0, 64], sizes = [9, 64], strides = [1, 1]} : vector<9x128xf32> to vector<9x64xf32>
    %71 = arith.maximumf %69, %70 : vector<9x64xf32>
    %72 = arith.maximumf %68, %71 : vector<9x64xf32>
    %c0_70 = arith.constant 0 : index
    %c0_71 = arith.constant 0 : index
    %73 = vector.load %arg5[%c0_70, %c0_71] : memref<1x64xf32, #tpu.memory_space<vmem>>, vector<1x64xf32>
    %74 = vector.broadcast %73 : vector<1x64xf32> to vector<9x64xf32>
    %75 = arith.addf %72, %74 : vector<9x64xf32>
    %cst_72 = arith.constant 0.000000e+00 : f32
    %76 = vector.broadcast %cst_72 : f32 to vector<9x64xf32>
    %77 = arith.maximumf %75, %76 : vector<9x64xf32>
    %c0_73 = arith.constant 0 : index
    %c0_74 = arith.constant 0 : index
    %78 = vector.load %arg16[%c0_73, %c0_74] : memref<10x64xf32, #tpu.memory_space<vmem>>, vector<9x64xf32>
    tpu.vector_store %arg16[%c0_73, %c0_74], %77 {strides = array<i32>} : memref<10x64xf32, #tpu.memory_space<vmem>>, vector<9x64xf32>,
    %cst_75 = arith.constant 0.000000e+00 : f32
    %79 = vector.broadcast %cst_75 : f32 to vector<2x32xf32>
    %c0_76 = arith.constant 0 : index
    %c0_77 = arith.constant 0 : index
    %80 = tpu.strided_load %arg16[%c0_76, %c0_77] {strides = array<i32: 5, 1>} : memref<10x64xf32, #tpu.memory_space<vmem>>, vector<2x64xf32>
    %81 = arith.truncf %80 : vector<2x64xf32> to vector<2x64xbf16>
    %c0_78 = arith.constant 0 : index
    %c0_79 = arith.constant 0 : index
    %c0_80 = arith.constant 0 : index
    %82 = vector.load %arg7[%c0_78, %c0_79, %c0_80] : memref<4x64x32xbf16, #tpu.memory_space<vmem>>, vector<1x64x32xbf16>
    %83 = vector.shape_cast %82 : vector<1x64x32xbf16> to vector<64x32xbf16>
    %cst_81 = arith.constant dense<0.000000e+00> : vector<2x32xf32>
    %84 = tpu.matmul %81, %83, %cst_81 {dimension_numbers = #tpu.dot_dimension_numbers<[1], [0], [0], [1], [0, 0, 1, 1], [], []>} : vector<2x64xbf16>, vector<64x32xbf16>, vector<2x32xf32> -> vector<2x32xf32>
    %85 = arith.addf %79, %84 : vector<2x32xf32>
    %c1_82 = arith.constant 1 : index
    %c0_83 = arith.constant 0 : index
    %86 = tpu.strided_load %arg16[%c1_82, %c0_83] {strides = array<i32: 5, 1>} : memref<10x64xf32, #tpu.memory_space<vmem>>, vector<2x64xf32>
    %87 = arith.truncf %86 : vector<2x64xf32> to vector<2x64xbf16>
    %c1_84 = arith.constant 1 : index
    %c0_85 = arith.constant 0 : index
    %c0_86 = arith.constant 0 : index
    %88 = vector.load %arg7[%c1_84, %c0_85, %c0_86] : memref<4x64x32xbf16, #tpu.memory_space<vmem>>, vector<1x64x32xbf16>
    %89 = vector.shape_cast %88 : vector<1x64x32xbf16> to vector<64x32xbf16>
    %cst_87 = arith.constant dense<0.000000e+00> : vector<2x32xf32>
    %90 = tpu.matmul %87, %89, %cst_87 {dimension_numbers = #tpu.dot_dimension_numbers<[1], [0], [0], [1], [0, 0, 1, 1], [], []>} : vector<2x64xbf16>, vector<64x32xbf16>, vector<2x32xf32> -> vector<2x32xf32>
    %91 = arith.addf %85, %90 : vector<2x32xf32>
    %c2_88 = arith.constant 2 : index
    %c0_89 = arith.constant 0 : index
    %92 = tpu.strided_load %arg16[%c2_88, %c0_89] {strides = array<i32: 5, 1>} : memref<10x64xf32, #tpu.memory_space<vmem>>, vector<2x64xf32>
    %93 = arith.truncf %92 : vector<2x64xf32> to vector<2x64xbf16>
    %c2_90 = arith.constant 2 : index
    %c0_91 = arith.constant 0 : index
    %c0_92 = arith.constant 0 : index
    %94 = vector.load %arg7[%c2_90, %c0_91, %c0_92] : memref<4x64x32xbf16, #tpu.memory_space<vmem>>, vector<1x64x32xbf16>
    %95 = vector.shape_cast %94 : vector<1x64x32xbf16> to vector<64x32xbf16>
    %cst_93 = arith.constant dense<0.000000e+00> : vector<2x32xf32>
    %96 = tpu.matmul %93, %95, %cst_93 {dimension_numbers = #tpu.dot_dimension_numbers<[1], [0], [0], [1], [0, 0, 1, 1], [], []>} : vector<2x64xbf16>, vector<64x32xbf16>, vector<2x32xf32> -> vector<2x32xf32>
    %97 = arith.addf %91, %96 : vector<2x32xf32>
    %c3 = arith.constant 3 : index
    %c0_94 = arith.constant 0 : index
    %98 = tpu.strided_load %arg16[%c3, %c0_94] {strides = array<i32: 5, 1>} : memref<10x64xf32, #tpu.memory_space<vmem>>, vector<2x64xf32>
    %99 = arith.truncf %98 : vector<2x64xf32> to vector<2x64xbf16>
    %c3_95 = arith.constant 3 : index
    %c0_96 = arith.constant 0 : index
    %c0_97 = arith.constant 0 : index
    %100 = vector.load %arg7[%c3_95, %c0_96, %c0_97] : memref<4x64x32xbf16, #tpu.memory_space<vmem>>, vector<1x64x32xbf16>
    %101 = vector.shape_cast %100 : vector<1x64x32xbf16> to vector<64x32xbf16>
    %cst_98 = arith.constant dense<0.000000e+00> : vector<2x32xf32>
    %102 = tpu.matmul %99, %101, %cst_98 {dimension_numbers = #tpu.dot_dimension_numbers<[1], [0], [0], [1], [0, 0, 1, 1], [], []>} : vector<2x64xbf16>, vector<64x32xbf16>, vector<2x32xf32> -> vector<2x32xf32>
    %103 = arith.addf %97, %102 : vector<2x32xf32>
    %c0_99 = arith.constant 0 : index
    %c0_100 = arith.constant 0 : index
    %104 = vector.load %arg8[%c0_99, %c0_100] : memref<1x32xf32, #tpu.memory_space<vmem>>, vector<1x32xf32>
    %105 = vector.broadcast %104 : vector<1x32xf32> to vector<2x32xf32>
    %106 = arith.addf %103, %105 : vector<2x32xf32>
    %cst_101 = arith.constant 0.000000e+00 : f32
    %107 = vector.broadcast %cst_101 : f32 to vector<2x32xf32>
    %108 = arith.maximumf %106, %107 : vector<2x32xf32>
    %109 = arith.truncf %108 : vector<2x32xf32> to vector<2x32xbf16>
    %c0_102 = arith.constant 0 : index
    %c0_103 = arith.constant 0 : index
    %110 = vector.load %arg9[%c0_102, %c0_103] : memref<32x32xbf16, #tpu.memory_space<vmem>>, vector<32x32xbf16>
    %cst_104 = arith.constant dense<0.000000e+00> : vector<2x32xf32>
    %111 = tpu.matmul %109, %110, %cst_104 {dimension_numbers = #tpu.dot_dimension_numbers<[1], [0], [0], [1], [0, 0, 1, 1], [], []>} : vector<2x32xbf16>, vector<32x32xbf16>, vector<2x32xf32> -> vector<2x32xf32>
    %c0_105 = arith.constant 0 : index
    %c0_106 = arith.constant 0 : index
    %112 = vector.load %arg10[%c0_105, %c0_106] : memref<1x32xf32, #tpu.memory_space<vmem>>, vector<1x32xf32>
    %113 = vector.broadcast %112 : vector<1x32xf32> to vector<2x32xf32>
    %114 = arith.addf %111, %113 : vector<2x32xf32>
    %cst_107 = arith.constant 0.000000e+00 : f32
    %115 = vector.broadcast %cst_107 : f32 to vector<2x32xf32>
    %116 = arith.maximumf %114, %115 : vector<2x32xf32>
    %117 = arith.truncf %116 : vector<2x32xf32> to vector<2x32xbf16>
    %c0_108 = arith.constant 0 : index
    %c0_109 = arith.constant 0 : index
    %118 = vector.load %arg11[%c0_108, %c0_109] : memref<32x128xbf16, #tpu.memory_space<vmem>>, vector<32x128xbf16>
    %cst_110 = arith.constant dense<0.000000e+00> : vector<2x128xf32>
    %119 = tpu.matmul %117, %118, %cst_110 {dimension_numbers = #tpu.dot_dimension_numbers<[1], [0], [0], [1], [0, 0, 1, 1], [], []>} : vector<2x32xbf16>, vector<32x128xbf16>, vector<2x128xf32> -> vector<2x128xf32>
    %c0_111 = arith.constant 0 : index
    %c0_112 = arith.constant 0 : index
    %120 = vector.load %arg12[%c0_111, %c0_112] : memref<1x128xf32, #tpu.memory_space<vmem>>, vector<1x128xf32>
    %121 = vector.broadcast %120 : vector<1x128xf32> to vector<2x128xf32>
    %122 = arith.addf %119, %121 : vector<2x128xf32>
    %c0_113 = arith.constant 0 : index
    %c0_114 = arith.constant 0 : index
    %123 = vector.load %arg13[%c0_113, %c0_114] : memref<2x128xf32, #tpu.memory_space<vmem>>, vector<2x128xf32>
    tpu.vector_store %arg13[%c0_113, %c0_114], %122 {strides = array<i32>} : memref<2x128xf32, #tpu.memory_space<vmem>>, vector<2x128xf32>,
    return
  }
  func.func @transform_0(%arg0: i32) -> (i32, i32) {
    %c0_i32 = arith.constant 0 : i32
    %c0_i32_0 = arith.constant 0 : i32
    return %arg0, %c0_i32 : i32, i32
  }
  func.func @transform_1(%arg0: i32) -> (i32, i32, i32) {
    %c0_i32 = arith.constant 0 : i32
    %c0_i32_0 = arith.constant 0 : i32
    %c0_i32_1 = arith.constant 0 : i32
    %c0_i32_2 = arith.constant 0 : i32
    return %c0_i32, %c0_i32_0, %c0_i32_1 : i32, i32, i32
  }
  func.func @transform_2(%arg0: i32) -> (i32, i32) {
    %c0_i32 = arith.constant 0 : i32
    %c0_i32_0 = arith.constant 0 : i32
    %c0_i32_1 = arith.constant 0 : i32
    return %c0_i32, %c0_i32_0 : i32, i32
  }
  func.func @transform_3(%arg0: i32) -> (i32, i32, i32) {
    %c0_i32 = arith.constant 0 : i32
    %c0_i32_0 = arith.constant 0 : i32
    %c0_i32_1 = arith.constant 0 : i32
    %c0_i32_2 = arith.constant 0 : i32
    return %c0_i32, %c0_i32_0, %c0_i32_1 : i32, i32, i32
  }
  func.func @transform_4(%arg0: i32) -> (i32, i32) {
    %c0_i32 = arith.constant 0 : i32
    %c0_i32_0 = arith.constant 0 : i32
    %c0_i32_1 = arith.constant 0 : i32
    return %c0_i32, %c0_i32_0 : i32, i32
  }
  func.func @transform_5(%arg0: i32) -> (i32, i32) {
    %c0_i32 = arith.constant 0 : i32
    %c0_i32_0 = arith.constant 0 : i32
    %c0_i32_1 = arith.constant 0 : i32
    return %c0_i32, %c0_i32_0 : i32, i32
  }
  func.func @transform_6(%arg0: i32) -> (i32, i32, i32) {
    %c0_i32 = arith.constant 0 : i32
    %c0_i32_0 = arith.constant 0 : i32
    %c0_i32_1 = arith.constant 0 : i32
    %c0_i32_2 = arith.constant 0 : i32
    return %c0_i32, %c0_i32_0, %c0_i32_1 : i32, i32, i32
  }
  func.func @transform_7(%arg0: i32) -> (i32, i32) {
    %c0_i32 = arith.constant 0 : i32
    %c0_i32_0 = arith.constant 0 : i32
    %c0_i32_1 = arith.constant 0 : i32
    return %c0_i32, %c0_i32_0 : i32, i32
  }
  func.func @transform_8(%arg0: i32) -> (i32, i32) {
    %c0_i32 = arith.constant 0 : i32
    %c0_i32_0 = arith.constant 0 : i32
    %c0_i32_1 = arith.constant 0 : i32
    return %c0_i32, %c0_i32_0 : i32, i32
  }
  func.func @transform_9(%arg0: i32) -> (i32, i32) {
    %c0_i32 = arith.constant 0 : i32
    %c0_i32_0 = arith.constant 0 : i32
    %c0_i32_1 = arith.constant 0 : i32
    return %c0_i32, %c0_i32_0 : i32, i32
  }
  func.func @transform_10(%arg0: i32) -> (i32, i32) {
    %c0_i32 = arith.constant 0 : i32
    %c0_i32_0 = arith.constant 0 : i32
    %c0_i32_1 = arith.constant 0 : i32
    return %c0_i32, %c0_i32_0 : i32, i32
  }
  func.func @transform_11(%arg0: i32) -> (i32, i32) {
    %c0_i32 = arith.constant 0 : i32
    %c0_i32_0 = arith.constant 0 : i32
    %c0_i32_1 = arith.constant 0 : i32
    return %c0_i32, %c0_i32_0 : i32, i32
  }
  func.func @transform_12(%arg0: i32) -> (i32, i32) {
    %c0_i32 = arith.constant 0 : i32
    %c0_i32_0 = arith.constant 0 : i32
    return %arg0, %c0_i32 : i32, i32
  }
}

</mosaic_0001>

<llo_original>
// kernel: forward.1
$region0: #{forward.1}
  #allocation0 [shape = 'u32[]', space=smem, size = 0x4, offset = 0x4, fixed_abs, tag = 'smem constant byte address 0x4 - core index']
  #allocation1 [shape = 'u32[72,128]{1,0:T(1,128)}', space=vmem, size = 0x9000, scoped, tag = 'internal scratch']
  #allocation2 [shape = 'f32[40,128]{1,0:T(8,128)}', space=vmem, size = 0x5000, scoped, tag = 'scratch operand']
  #allocation3 [shape = 'f32[20,64]{1,0:T(8,128)}', space=vmem, size = 0x3000, scoped, tag = 'scratch operand']
  #allocation4 [shape = 'f32[10,64]{1,0:T(8,128)}', space=vmem, size = 0x2000, scoped, tag = 'scratch operand']
  %s0 = inlined_call_operand.vmem [shape: f32[40,128], index: 0, kind: input, shape index: {}]
  %s1 = inlined_call_operand.vmem [shape: bf16[3,128,128], index: 1, kind: input, shape index: {}]
  %s2 = inlined_call_operand.vmem [shape: f32[1,64], index: 2, kind: input, shape index: {}]
  %s3 = inlined_call_operand.vmem [shape: bf16[3,64,128], index: 3, kind: input, shape index: {}]
  %s4 = inlined_call_operand.vmem [shape: f32[1,64], index: 4, kind: input, shape index: {}]
  %s5 = inlined_call_operand.vmem [shape: f32[20,1], index: 5, kind: input, shape index: {}]
  %s6 = inlined_call_operand.vmem [shape: bf16[4,64,32], index: 6, kind: input, shape index: {}]
  %s7 = inlined_call_operand.vmem [shape: f32[1,32], index: 7, kind: input, shape index: {}]
  %s8 = inlined_call_operand.vmem [shape: bf16[32,32], index: 8, kind: input, shape index: {}]
  %s9 = inlined_call_operand.vmem [shape: f32[1,32], index: 9, kind: input, shape index: {}]
  %s10 = inlined_call_operand.vmem [shape: bf16[32,128], index: 10, kind: input, shape index: {}]
  %s11 = inlined_call_operand.vmem [shape: f32[1,128], index: 11, kind: input, shape index: {}]
  %s12 = inlined_call_operand.hbm [shape: f32[2,128], index: 12, kind: output, shape index: {}]
  %s13 = sld [smem:[#allocation0]]
  $region58: #{forward.1} parent=0
    _
  %s15 = ssub.s32 1, %s13
  %s16 = scalar_select 0, %s15, %s13
  $region1: #{forward.1} parent=0
    #allocation5 [shape = 'u8[1024]{0}', space=vmem, size = 0x400, scoped, tag = 'output window, operand 0, single buffered']
    #allocation6 [shape = 's32[1]{0}', space=sflag, size = 0x4, scoped, tag = 'scoped memory for forward.1']
    %17 = vsyncpa [#allocation6], 0
    // Predicated region
    $region2: #{forward.1} parent=1 // pred_check
      _
    $region3: #{forward.1} parent=1 // pred_check_branch
      %19 = sbr.rel (0) target = $region5
    $region4: #{forward.1} parent=1 // pred_region
      _
    $region5: #{forward.1} parent=1 // pred_fallthru
      _
    // Predicated region
    $region6: #{forward.1} parent=1 // pred_check
      _
    $region7: #{forward.1} parent=1 // pred_check_branch
      %21 = sbr.rel (0) target = $region9
    $region8: #{forward.1} parent=1 // pred_region
      _
    $region9: #{forward.1} parent=1 // pred_fallthru
      _
    // Predicated region
    $region10: #{forward.1} parent=1 // pred_check
      _
    $region11: #{forward.1} parent=1 // pred_check_branch
      %23 = sbr.rel (0) target = $region13
    $region12: #{forward.1} parent=1 // pred_region
      _
    $region13: #{forward.1} parent=1 // pred_fallthru
      _
    // Predicated region
    $region14: #{forward.1} parent=1 // pred_check
      _
    $region15: #{forward.1} parent=1 // pred_check_branch
      %25 = sbr.rel (0) target = $region17
    $region16: #{forward.1} parent=1 // pred_region
      _
    $region17: #{forward.1} parent=1 // pred_fallthru
      _
    // Predicated region
    $region18: #{forward.1} parent=1 // pred_check
      _
    $region19: #{forward.1} parent=1 // pred_check_branch
      %27 = sbr.rel (0) target = $region21
    $region20: #{forward.1} parent=1 // pred_region
      _
    $region21: #{forward.1} parent=1 // pred_fallthru
      _
    // Predicated region
    $region22: #{forward.1} parent=1 // pred_check
      _
    $region23: #{forward.1} parent=1 // pred_check_branch
      %29 = sbr.rel (0) target = $region25
    $region24: #{forward.1} parent=1 // pred_region
      _
    $region25: #{forward.1} parent=1 // pred_fallthru
      _
    // Predicated region
    $region26: #{forward.1} parent=1 // pred_check
      _
    $region27: #{forward.1} parent=1 // pred_check_branch
      %31 = sbr.rel (0) target = $region29
    $region28: #{forward.1} parent=1 // pred_region
      _
    $region29: #{forward.1} parent=1 // pred_fallthru
      _
    // Predicated region
    $region30: #{forward.1} parent=1 // pred_check
      _
    $region31: #{forward.1} parent=1 // pred_check_branch
      %33 = sbr.rel (0) target = $region33
    $region32: #{forward.1} parent=1 // pred_region
      _
    $region33: #{forward.1} parent=1 // pred_fallthru
      _
    // Predicated region
    $region34: #{forward.1} parent=1 // pred_check
      _
    $region35: #{forward.1} parent=1 // pred_check_branch
      %35 = sbr.rel (0) target = $region37
    $region36: #{forward.1} parent=1 // pred_region
      _
    $region37: #{forward.1} parent=1 // pred_fallthru
      _
    // Predicated region
    $region38: #{forward.1} parent=1 // pred_check
      _
    $region39: #{forward.1} parent=1 // pred_check_branch
      %37 = sbr.rel (0) target = $region41
    $region40: #{forward.1} parent=1 // pred_region
      _
    $region41: #{forward.1} parent=1 // pred_fallthru
      _
    // Predicated region
    $region42: #{forward.1} parent=1 // pred_check
      _
    $region43: #{forward.1} parent=1 // pred_check_branch
      %39 = sbr.rel (0) target = $region45
    $region44: #{forward.1} parent=1 // pred_region
      _
    $region45: #{forward.1} parent=1 // pred_fallthru
      _
    // Predicated region
    $region46: #{forward.1} parent=1 // pred_check
      _
    $region47: #{forward.1} parent=1 // pred_check_branch
      %41 = sbr.rel (0) target = $region49
    $region48: #{forward.1} parent=1 // pred_region
      _
    $region49: #{forward.1} parent=1 // pred_fallthru
      _
    %v43 = vld [vmem:[%s0] sm:$0xff]
    %v44 = vld [vmem:[%s0 + $0x8] sm:$0xff]
    %v45 = vld [vmem:[%s0 + $0x10] sm:$0xff]
    %v46 = vld [vmem:[%s0 + $0x18] sm:$0xff]
    %v47 = vld [vmem:[%s0 + $0x20] sm:$0x3f]
    %v48 = vpack.c.bf16 %v44, %v43
    %v49 = vpack.c.bf16 %v46, %v45
    %v50 = vpack.c.bf16 %v47, %v47
    %v51 = vld [vmem:[%s1] sm:$0xf]
    %v52 = vld [vmem:[%s1 + $0x4] sm:$0xf]
    %v53 = vld [vmem:[%s1 + $0x8] sm:$0xf]
    %v54 = vld [vmem:[%s1 + $0xc] sm:$0xf]
    %v55 = vld [vmem:[%s1 + $0x10] sm:$0xf]
    %v56 = vld [vmem:[%s1 + $0x14] sm:$0xf]
    %v57 = vld [vmem:[%s1 + $0x18] sm:$0xf]
    %v58 = vld [vmem:[%s1 + $0x1c] sm:$0xf]
    %v59 = vld [vmem:[%s1 + $0x20] sm:$0xf]
    %v60 = vld [vmem:[%s1 + $0x24] sm:$0xf]
    %v61 = vld [vmem:[%s1 + $0x28] sm:$0xf]
    %v62 = vld [vmem:[%s1 + $0x2c] sm:$0xf]
    %v63 = vld [vmem:[%s1 + $0x30] sm:$0xf]
    %v64 = vld [vmem:[%s1 + $0x34] sm:$0xf]
    %v65 = vld [vmem:[%s1 + $0x38] sm:$0xf]
    %v66 = vld [vmem:[%s1 + $0x3c] sm:$0xf]
    %v83 = vunpack.c.l.b16 %v51
    %v84 = vunpack.c.l.b16 %v52
    %v85 = vunpack.c.l.b16 %v53
    %v86 = vunpack.c.l.b16 %v54
    %v87 = vunpack.c.l.b16 %v55
    %v88 = vunpack.c.l.b16 %v56
    %v89 = vunpack.c.l.b16 %v57
    %v90 = vunpack.c.l.b16 %v58
    %v91 = vunpack.c.l.b16 %v59
    %v92 = vunpack.c.l.b16 %v60
    %v93 = vunpack.c.l.b16 %v61
    %v94 = vunpack.c.l.b16 %v62
    %v95 = vunpack.c.l.b16 %v63
    %v96 = vunpack.c.l.b16 %v64
    %v97 = vunpack.c.l.b16 %v65
    %v98 = vunpack.c.l.b16 %v66
    %v99 = vpack.c.b16 %v84, %v83
    %v100 = vpack.c.b16 %v86, %v85
    %v101 = vpack.c.b16 %v88, %v87
    %v102 = vpack.c.b16 %v90, %v89
    %v103 = vpack.c.b16 %v92, %v91
    %v104 = vpack.c.b16 %v94, %v93
    %v105 = vpack.c.b16 %v96, %v95
    %v106 = vpack.c.b16 %v98, %v97
    %115 = vmatpush.bf16.msra.mxu0 %v106
    %116 = vmatpush.bf16.msra.mxu0 %v105
    %117 = vmatpush.bf16.msra.mxu0 %v104
    %118 = vmatpush.bf16.msra.mxu0 %v103
    %119 = vmatpush.bf16.msra.mxu0 %v102
    %120 = vmatpush.bf16.msra.mxu0 %v101
    %121 = vmatpush.bf16.msra.mxu0 %v100
    %122 = vmatpush.bf16.msra.mxu0 %v99
    %123 = vmatmul.bf16.gmra.mxu0 %v48
    %v124 = vpop.f32.mrf.mxu0
    %v125 = vadd.f32 0.0, %v124
    %v126 = vpop.f32.mrf.mxu0
    %v127 = vadd.f32 0.0, %v126
    %128 = vmatmul.bf16.gmra.mxu0 %v49
    %v129 = vpop.f32.mrf.mxu0
    %v130 = vadd.f32 0.0, %v129
    %v131 = vpop.f32.mrf.mxu0
    %v132 = vadd.f32 0.0, %v131
    %133 = vmatmul.bf16.gmra.mxu0 %v50
    %v134 = vpop.f32.mrf.mxu0
    %v135 = vadd.f32 0.0, %v134
    %v136 = vpop.f32.mrf.mxu0
    %137 = vdwg.mxu0
    %138 = vst [vmem:[#allocation2] sm:$0xff] %v125
    %139 = vst [vmem:[#allocation2 + $0x8] sm:$0xff] %v127
    %140 = vst [vmem:[#allocation2 + $0x10] sm:$0xff] %v130
    %141 = vst [vmem:[#allocation2 + $0x18] sm:$0xff] %v132
    %142 = vst [vmem:[#allocation2 + $0x20] sm:$0x3f] %v135
    %v143 = vld [vmem:[%s0 + $0x1] sm:$0xff]
    %v144 = vld [vmem:[%s0 + $0x9] sm:$0xff]
    %v145 = vld [vmem:[%s0 + $0x11] sm:$0xff]
    %v146 = vld [vmem:[%s0 + $0x19] sm:$0xff]
    %v147 = vld [vmem:[%s0 + $0x21] sm:$0x3f]
    %v148 = vpack.c.bf16 %v144, %v143
    %v149 = vpack.c.bf16 %v146, %v145
    %v150 = vpack.c.bf16 %v147, %v147
    %s151 = scalar_lea.vmem %s1, 64
    %v152 = vld [vmem:[%s151] sm:$0xf]
    %v153 = vld [vmem:[%s151 + $0x4] sm:$0xf]
    %v154 = vld [vmem:[%s151 + $0x8] sm:$0xf]
    %v155 = vld [vmem:[%s151 + $0xc] sm:$0xf]
    %v156 = vld [vmem:[%s151 + $0x10] sm:$0xf]
    %v157 = vld [vmem:[%s151 + $0x14] sm:$0xf]
    %v158 = vld [vmem:[%s151 + $0x18] sm:$0xf]
    %v159 = vld [vmem:[%s151 + $0x1c] sm:$0xf]
    %v160 = vld [vmem:[%s151 + $0x20] sm:$0xf]
    %v161 = vld [vmem:[%s151 + $0x24] sm:$0xf]
    %v162 = vld [vmem:[%s151 + $0x28] sm:$0xf]
    %v163 = vld [vmem:[%s151 + $0x2c] sm:$0xf]
    %v164 = vld [vmem:[%s151 + $0x30] sm:$0xf]
    %v165 = vld [vmem:[%s151 + $0x34] sm:$0xf]
    %v166 = vld [vmem:[%s151 + $0x38] sm:$0xf]
    %v167 = vld [vmem:[%s151 + $0x3c] sm:$0xf]
    %v184 = vunpack.c.l.b16 %v152
    %v185 = vunpack.c.l.b16 %v153
    %v186 = vunpack.c.l.b16 %v154
    %v187 = vunpack.c.l.b16 %v155
    %v188 = vunpack.c.l.b16 %v156
    %v189 = vunpack.c.l.b16 %v157
    %v190 = vunpack.c.l.b16 %v158
    %v191 = vunpack.c.l.b16 %v159
    %v192 = vunpack.c.l.b16 %v160
    %v193 = vunpack.c.l.b16 %v161
    %v194 = vunpack.c.l.b16 %v162
    %v195 = vunpack.c.l.b16 %v163
    %v196 = vunpack.c.l.b16 %v164
    %v197 = vunpack.c.l.b16 %v165
    %v198 = vunpack.c.l.b16 %v166
    %v199 = vunpack.c.l.b16 %v167
    %v200 = vpack.c.b16 %v185, %v184
    %v201 = vpack.c.b16 %v187, %v186
    %v202 = vpack.c.b16 %v189, %v188
    %v203 = vpack.c.b16 %v191, %v190
    %v204 = vpack.c.b16 %v193, %v192
    %v205 = vpack.c.b16 %v195, %v194
    %v206 = vpack.c.b16 %v197, %v196
    %v207 = vpack.c.b16 %v199, %v198
    %216 = vmatpush.bf16.msra.mxu0 %v207
    %217 = vmatpush.bf16.msra.mxu0 %v206
    %218 = vmatpush.bf16.msra.mxu0 %v205
    %219 = vmatpush.bf16.msra.mxu0 %v204
    %220 = vmatpush.bf16.msra.mxu0 %v203
    %221 = vmatpush.bf16.msra.mxu0 %v202
    %222 = vmatpush.bf16.msra.mxu0 %v201
    %223 = vmatpush.bf16.msra.mxu0 %v200
    %224 = vmatmul.bf16.gmra.mxu0 %v148
    %v225 = vpop.f32.mrf.mxu0
    %v226 = vadd.f32 0.0, %v225
    %v227 = vpop.f32.mrf.mxu0
    %v228 = vadd.f32 0.0, %v227
    %229 = vmatmul.bf16.gmra.mxu0 %v149
    %v230 = vpop.f32.mrf.mxu0
    %v231 = vadd.f32 0.0, %v230
    %v232 = vpop.f32.mrf.mxu0
    %v233 = vadd.f32 0.0, %v232
    %234 = vmatmul.bf16.gmra.mxu0 %v150
    %v235 = vpop.f32.mrf.mxu0
    %v236 = vadd.f32 0.0, %v235
    %v237 = vpop.f32.mrf.mxu0
    %238 = vdwg.mxu0
    %v239 = vld [vmem:[#allocation2] sm:$0xff]
    %v240 = vld [vmem:[#allocation2 + $0x8] sm:$0xff]
    %v241 = vld [vmem:[#allocation2 + $0x10] sm:$0xff]
    %v242 = vld [vmem:[#allocation2 + $0x18] sm:$0xff]
    %v243 = vld [vmem:[#allocation2 + $0x20] sm:$0x3f]
    %v244 = vadd.f32 %v239, %v226
    %v245 = vadd.f32 %v240, %v228
    %v246 = vadd.f32 %v241, %v231
    %v247 = vadd.f32 %v242, %v233
    %v248 = vadd.f32 %v243, %v236
    %249 = vst [vmem:[#allocation2] sm:$0xff] %v244
    %250 = vst [vmem:[#allocation2 + $0x8] sm:$0xff] %v245
    %251 = vst [vmem:[#allocation2 + $0x10] sm:$0xff] %v246
    %252 = vst [vmem:[#allocation2 + $0x18] sm:$0xff] %v247
    %253 = vst [vmem:[#allocation2 + $0x20] sm:$0x3f] %v248
    %v254 = vld [vmem:[%s0 + $0x2] sm:$0xff]
    %v255 = vld [vmem:[%s0 + $0xa] sm:$0xff]
    %v256 = vld [vmem:[%s0 + $0x12] sm:$0xff]
    %v257 = vld [vmem:[%s0 + $0x1a] sm:$0xff]
    %v258 = vld [vmem:[%s0 + $0x22] sm:$0x3f]
    %v259 = vpack.c.bf16 %v255, %v254
    %v260 = vpack.c.bf16 %v257, %v256
    %v261 = vpack.c.bf16 %v258, %v258
    %s262 = scalar_lea.vmem %s1, 128
    %v263 = vld [vmem:[%s262] sm:$0xf]
    %v264 = vld [vmem:[%s262 + $0x4] sm:$0xf]
    %v265 = vld [vmem:[%s262 + $0x8] sm:$0xf]
    %v266 = vld [vmem:[%s262 + $0xc] sm:$0xf]
    %v267 = vld [vmem:[%s262 + $0x10] sm:$0xf]
    %v268 = vld [vmem:[%s262 + $0x14] sm:$0xf]
    %v269 = vld [vmem:[%s262 + $0x18] sm:$0xf]
    %v270 = vld [vmem:[%s262 + $0x1c] sm:$0xf]
    %v271 = vld [vmem:[%s262 + $0x20] sm:$0xf]
    %v272 = vld [vmem:[%s262 + $0x24] sm:$0xf]
    %v273 = vld [vmem:[%s262 + $0x28] sm:$0xf]
    %v274 = vld [vmem:[%s262 + $0x2c] sm:$0xf]
    %v275 = vld [vmem:[%s262 + $0x30] sm:$0xf]
    %v276 = vld [vmem:[%s262 + $0x34] sm:$0xf]
    %v277 = vld [vmem:[%s262 + $0x38] sm:$0xf]
    %v278 = vld [vmem:[%s262 + $0x3c] sm:$0xf]
    %v295 = vunpack.c.l.b16 %v263
    %v296 = vunpack.c.l.b16 %v264
    %v297 = vunpack.c.l.b16 %v265
    %v298 = vunpack.c.l.b16 %v266
    %v299 = vunpack.c.l.b16 %v267
    %v300 = vunpack.c.l.b16 %v268
    %v301 = vunpack.c.l.b16 %v269
    %v302 = vunpack.c.l.b16 %v270
    %v303 = vunpack.c.l.b16 %v271
    %v304 = vunpack.c.l.b16 %v272
    %v305 = vunpack.c.l.b16 %v273
    %v306 = vunpack.c.l.b16 %v274
    %v307 = vunpack.c.l.b16 %v275
    %v308 = vunpack.c.l.b16 %v276
    %v309 = vunpack.c.l.b16 %v277
    %v310 = vunpack.c.l.b16 %v278
    %v311 = vpack.c.b16 %v296, %v295
    %v312 = vpack.c.b16 %v298, %v297
    %v313 = vpack.c.b16 %v300, %v299
    %v314 = vpack.c.b16 %v302, %v301
    %v315 = vpack.c.b16 %v304, %v303
    %v316 = vpack.c.b16 %v306, %v305
    %v317 = vpack.c.b16 %v308, %v307
    %v318 = vpack.c.b16 %v310, %v309
    %327 = vmatpush.bf16.msra.mxu0 %v318
    %328 = vmatpush.bf16.msra.mxu0 %v317
    %329 = vmatpush.bf16.msra.mxu0 %v316
    %330 = vmatpush.bf16.msra.mxu0 %v315
    %331 = vmatpush.bf16.msra.mxu0 %v314
    %332 = vmatpush.bf16.msra.mxu0 %v313
    %333 = vmatpush.bf16.msra.mxu0 %v312
    %334 = vmatpush.bf16.msra.mxu0 %v311
    %335 = vmatmul.bf16.gmra.mxu0 %v259
    %v336 = vpop.f32.mrf.mxu0
    %v337 = vadd.f32 0.0, %v336
    %v338 = vpop.f32.mrf.mxu0
    %v339 = vadd.f32 0.0, %v338
    %340 = vmatmul.bf16.gmra.mxu0 %v260
    %v341 = vpop.f32.mrf.mxu0
    %v342 = vadd.f32 0.0, %v341
    %v343 = vpop.f32.mrf.mxu0
    %v344 = vadd.f32 0.0, %v343
    %345 = vmatmul.bf16.gmra.mxu0 %v261
    %v346 = vpop.f32.mrf.mxu0
    %v347 = vadd.f32 0.0, %v346
    %v348 = vpop.f32.mrf.mxu0
    %349 = vdwg.mxu0
    %v350 = vld [vmem:[#allocation2] sm:$0xff]
    %v351 = vld [vmem:[#allocation2 + $0x8] sm:$0xff]
    %v352 = vld [vmem:[#allocation2 + $0x10] sm:$0xff]
    %v353 = vld [vmem:[#allocation2 + $0x18] sm:$0xff]
    %v354 = vld [vmem:[#allocation2 + $0x20] sm:$0x3f]
    %v355 = vadd.f32 %v350, %v337
    %v356 = vadd.f32 %v351, %v339
    %v357 = vadd.f32 %v352, %v342
    %v358 = vadd.f32 %v353, %v344
    %v359 = vadd.f32 %v354, %v347
    %360 = vst [vmem:[#allocation2] sm:$0xff] %v355
    %361 = vst [vmem:[#allocation2 + $0x8] sm:$0xff] %v356
    %362 = vst [vmem:[#allocation2 + $0x10] sm:$0xff] %v357
    %363 = vst [vmem:[#allocation2 + $0x18] sm:$0xff] %v358
    %364 = vst [vmem:[#allocation2 + $0x20] sm:$0x3f] %v359
    %v365 = vld [vmem:[#allocation2] ss:$2 sm:$0xff]
    %s366 = scalar_lea.vmem [#allocation2], 16
    %v367 = vld [vmem:[%s366] ss:$2 sm:$0xff]
    %s368 = scalar_lea.vmem [#allocation2], 32
    %v369 = vld [vmem:[%s368] ss:$2 sm:$0x7]
    %s370 = scalar_lea.vmem [#allocation2], 1
    %v371 = vld [vmem:[%s370] ss:$2 sm:$0xff]
    %s372 = scalar_lea.vmem [#allocation2], 17
    %v373 = vld [vmem:[%s372] ss:$2 sm:$0xff]
    %s374 = scalar_lea.vmem [#allocation2], 33
    %v375 = vld [vmem:[%s374] ss:$2 sm:$0x7]
    %379 = vrot.lane.b32.xlu0 %v365, 64
    %v380 = vpop.permute.xlu0 %379
    %381 = vrot.lane.b32.xlu0 %v367, 64
    %v382 = vpop.permute.xlu0 %381
    %383 = vrot.lane.b32.xlu0 %v369, 64
    %v384 = vpop.permute.xlu0 %383
    %v388 = vmax.f32 %v365, %v380
    %v389 = vmax.f32 %v367, %v382
    %v390 = vmax.f32 %v369, %v384
    %394 = vrot.lane.b32.xlu0 %v371, 64
    %v395 = vpop.permute.xlu0 %394
    %396 = vrot.lane.b32.xlu0 %v373, 64
    %v397 = vpop.permute.xlu0 %396
    %398 = vrot.lane.b32.xlu0 %v375, 64
    %v399 = vpop.permute.xlu0 %398
    %v403 = vmax.f32 %v371, %v395
    %v404 = vmax.f32 %v373, %v397
    %v405 = vmax.f32 %v375, %v399
    %v406 = vmax.f32 %v388, %v403
    %v407 = vmax.f32 %v389, %v404
    %v408 = vmax.f32 %v390, %v405
    %v409 = vld [vmem:[%s2] sm:$0x1]
    %v411 = vperm.slane %v409, 0
    %v413 = vadd.f32 %v406, %v411
    %v414 = vadd.f32 %v407, %v411
    %v415 = vadd.f32 %v408, %v411
    %v416 = vmax.f32 %v413, 0.0
    %v417 = vmax.f32 %v414, 0.0
    %v418 = vmax.f32 %v415, 0.0
    %v419 = vld [vmem:[%s5] sm:$0xff]
    %v420 = vld [vmem:[%s5 + $0x8] sm:$0xff]
    %v421 = vld [vmem:[%s5 + $0x10] sm:$0x7]
    %423 = vset.pattern.permute.xlu0 0
    %424 = vperm.xlu0 %423, %v419
    %v425 = vpop.permute.xlu0 %424
    %428 = vset.pattern.permute.xlu0 0
    %429 = vperm.xlu0 %428, %v420
    %v430 = vpop.permute.xlu0 %429
    %433 = vset.pattern.permute.xlu0 0
    %434 = vperm.xlu0 %433, %v421
    %v435 = vpop.permute.xlu0 %434
    %v437 = vmul.f32 %v416, %v425
    %v438 = vmul.f32 %v417, %v430
    %v439 = vmul.f32 %v418, %v435
    %vm440 = vcmask 516096
    %441 = vst.msk [vmem:[#allocation3] sm:$0x1] %vm440, 0.0
    %vm442 = vcmask 523264
    %443 = vst.msk [vmem:[#allocation3 + $0x1] sm:$0xff] %vm442, %v437
    %444 = vst.msk [vmem:[#allocation3 + $0x9] sm:$0xff] %vm442, %v438
    %vm445 = vcmask 518144
    %446 = vst.msk [vmem:[#allocation3 + $0x11] sm:$0x7] %vm445, %v439
    %v447 = vld [vmem:[#allocation3] sm:$0xff]
    %v448 = vld [vmem:[#allocation3 + $0x8] sm:$0xff]
    %v449 = vld [vmem:[#allocation3 + $0x10] sm:$0x3]
    %v450 = vpack.c.bf16 %v448, %v447
    %v451 = vpack.c.bf16 %v449, %v449
    %v452 = vld [vmem:[%s3] sm:$0xf]
    %v453 = vld [vmem:[%s3 + $0x4] sm:$0xf]
    %v454 = vld [vmem:[%s3 + $0x8] sm:$0xf]
    %v455 = vld [vmem:[%s3 + $0xc] sm:$0xf]
    %v456 = vld [vmem:[%s3 + $0x10] sm:$0xf]
    %v457 = vld [vmem:[%s3 + $0x14] sm:$0xf]
    %v458 = vld [vmem:[%s3 + $0x18] sm:$0xf]
    %v459 = vld [vmem:[%s3 + $0x1c] sm:$0xf]
    %v468 = vunpack.c.l.b16 %v452
    %v469 = vunpack.c.l.b16 %v453
    %v470 = vunpack.c.l.b16 %v454
    %v471 = vunpack.c.l.b16 %v455
    %v472 = vunpack.c.l.b16 %v456
    %v473 = vunpack.c.l.b16 %v457
    %v474 = vunpack.c.l.b16 %v458
    %v475 = vunpack.c.l.b16 %v459
    %v476 = vpack.c.b16 %v469, %v468
    %v477 = vpack.c.b16 %v471, %v470
    %v478 = vpack.c.b16 %v473, %v472
    %v479 = vpack.c.b16 %v475, %v474
    %v485 = vsel %vm442, %v450, 0
    %v488 = vsel %vm442, %v451, 0
    %490 = vmatpush.bf16.msra.mxu0 0
    %491 = vmatpush.bf16.msra.mxu0 0
    %492 = vmatpush.bf16.msra.mxu0 0
    %493 = vmatpush.bf16.msra.mxu0 0
    %494 = vmatpush.bf16.msra.mxu0 %v479
    %495 = vmatpush.bf16.msra.mxu0 %v478
    %496 = vmatpush.bf16.msra.mxu0 %v477
    %497 = vmatpush.bf16.msra.mxu0 %v476
    %498 = vmatmul.bf16.gmra.mxu0 %v485
    %v499 = vpop.f32.mrf.mxu0
    %v500 = vadd.f32 0.0, %v499
    %v501 = vpop.f32.mrf.mxu0
    %v502 = vadd.f32 0.0, %v501
    %503 = vmatmul.bf16.gmra.mxu0 %v488
    %v504 = vpop.f32.mrf.mxu0
    %v505 = vadd.f32 0.0, %v504
    %v506 = vpop.f32.mrf.mxu0
    %507 = vdwg.mxu0
    %508 = vst [vmem:[#allocation2] sm:$0xff] %v500
    %509 = vst [vmem:[#allocation2 + $0x8] sm:$0xff] %v502
    %510 = vst [vmem:[#allocation2 + $0x10] sm:$0x3] %v505
    %v511 = vld [vmem:[#allocation3 + $0x1] sm:$0xff]
    %v512 = vld [vmem:[#allocation3 + $0x9] sm:$0xff]
    %v513 = vld [vmem:[#allocation3 + $0x11] sm:$0x3]
    %v514 = vpack.c.bf16 %v512, %v511
    %v515 = vpack.c.bf16 %v513, %v513
    %s516 = scalar_lea.vmem %s3, 32
    %v517 = vld [vmem:[%s516] sm:$0xf]
    %v518 = vld [vmem:[%s516 + $0x4] sm:$0xf]
    %v519 = vld [vmem:[%s516 + $0x8] sm:$0xf]
    %v520 = vld [vmem:[%s516 + $0xc] sm:$0xf]
    %v521 = vld [vmem:[%s516 + $0x10] sm:$0xf]
    %v522 = vld [vmem:[%s516 + $0x14] sm:$0xf]
    %v523 = vld [vmem:[%s516 + $0x18] sm:$0xf]
    %v524 = vld [vmem:[%s516 + $0x1c] sm:$0xf]
    %v533 = vunpack.c.l.b16 %v517
    %v534 = vunpack.c.l.b16 %v518
    %v535 = vunpack.c.l.b16 %v519
    %v536 = vunpack.c.l.b16 %v520
    %v537 = vunpack.c.l.b16 %v521
    %v538 = vunpack.c.l.b16 %v522
    %v539 = vunpack.c.l.b16 %v523
    %v540 = vunpack.c.l.b16 %v524
    %v541 = vpack.c.b16 %v534, %v533
    %v542 = vpack.c.b16 %v536, %v535
    %v543 = vpack.c.b16 %v538, %v537
    %v544 = vpack.c.b16 %v540, %v539
    %v550 = vsel %vm442, %v514, 0
    %v553 = vsel %vm442, %v515, 0
    %555 = vmatpush.bf16.msra.mxu0 0
    %556 = vmatpush.bf16.msra.mxu0 0
    %557 = vmatpush.bf16.msra.mxu0 0
    %558 = vmatpush.bf16.msra.mxu0 0
    %559 = vmatpush.bf16.msra.mxu0 %v544
    %560 = vmatpush.bf16.msra.mxu0 %v543
    %561 = vmatpush.bf16.msra.mxu0 %v542
    %562 = vmatpush.bf16.msra.mxu0 %v541
    %563 = vmatmul.bf16.gmra.mxu0 %v550
    %v564 = vpop.f32.mrf.mxu0
    %v565 = vadd.f32 0.0, %v564
    %v566 = vpop.f32.mrf.mxu0
    %v567 = vadd.f32 0.0, %v566
    %568 = vmatmul.bf16.gmra.mxu0 %v553
    %v569 = vpop.f32.mrf.mxu0
    %v570 = vadd.f32 0.0, %v569
    %v571 = vpop.f32.mrf.mxu0
    %572 = vdwg.mxu0
    %v573 = vld [vmem:[#allocation2] sm:$0xff]
    %v574 = vld [vmem:[#allocation2 + $0x8] sm:$0xff]
    %v575 = vld [vmem:[#allocation2 + $0x10] sm:$0x3]
    %v576 = vadd.f32 %v573, %v565
    %v577 = vadd.f32 %v574, %v567
    %v578 = vadd.f32 %v575, %v570
    %579 = vst [vmem:[#allocation2] sm:$0xff] %v576
    %580 = vst [vmem:[#allocation2 + $0x8] sm:$0xff] %v577
    %581 = vst [vmem:[#allocation2 + $0x10] sm:$0x3] %v578
    %v582 = vld [vmem:[#allocation3 + $0x2] sm:$0xff]
    %v583 = vld [vmem:[#allocation3 + $0xa] sm:$0xff]
    %v584 = vld [vmem:[#allocation3 + $0x12] sm:$0x3]
    %v585 = vpack.c.bf16 %v583, %v582
    %v586 = vpack.c.bf16 %v584, %v584
    %s587 = scalar_lea.vmem %s3, 64
    %v588 = vld [vmem:[%s587] sm:$0xf]
    %v589 = vld [vmem:[%s587 + $0x4] sm:$0xf]
    %v590 = vld [vmem:[%s587 + $0x8] sm:$0xf]
    %v591 = vld [vmem:[%s587 + $0xc] sm:$0xf]
    %v592 = vld [vmem:[%s587 + $0x10] sm:$0xf]
    %v593 = vld [vmem:[%s587 + $0x14] sm:$0xf]
    %v594 = vld [vmem:[%s587 + $0x18] sm:$0xf]
    %v595 = vld [vmem:[%s587 + $0x1c] sm:$0xf]
    %v604 = vunpack.c.l.b16 %v588
    %v605 = vunpack.c.l.b16 %v589
    %v606 = vunpack.c.l.b16 %v590
    %v607 = vunpack.c.l.b16 %v591
    %v608 = vunpack.c.l.b16 %v592
    %v609 = vunpack.c.l.b16 %v593
    %v610 = vunpack.c.l.b16 %v594
    %v611 = vunpack.c.l.b16 %v595
    %v612 = vpack.c.b16 %v605, %v604
    %v613 = vpack.c.b16 %v607, %v606
    %v614 = vpack.c.b16 %v609, %v608
    %v615 = vpack.c.b16 %v611, %v610
    %v621 = vsel %vm442, %v585, 0
    %v624 = vsel %vm442, %v586, 0
    %626 = vmatpush.bf16.msra.mxu0 0
    %627 = vmatpush.bf16.msra.mxu0 0
    %628 = vmatpush.bf16.msra.mxu0 0
    %629 = vmatpush.bf16.msra.mxu0 0
    %630 = vmatpush.bf16.msra.mxu0 %v615
    %631 = vmatpush.bf16.msra.mxu0 %v614
    %632 = vmatpush.bf16.msra.mxu0 %v613
    %633 = vmatpush.bf16.msra.mxu0 %v612
    %634 = vmatmul.bf16.gmra.mxu0 %v621
    %v635 = vpop.f32.mrf.mxu0
    %v636 = vadd.f32 0.0, %v635
    %v637 = vpop.f32.mrf.mxu0
    %v638 = vadd.f32 0.0, %v637
    %639 = vmatmul.bf16.gmra.mxu0 %v624
    %v640 = vpop.f32.mrf.mxu0
    %v641 = vadd.f32 0.0, %v640
    %v642 = vpop.f32.mrf.mxu0
    %643 = vdwg.mxu0
    %v644 = vld [vmem:[#allocation2] sm:$0xff]
    %v645 = vld [vmem:[#allocation2 + $0x8] sm:$0xff]
    %v646 = vld [vmem:[#allocation2 + $0x10] sm:$0x3]
    %v647 = vadd.f32 %v644, %v636
    %v648 = vadd.f32 %v645, %v638
    %v649 = vadd.f32 %v646, %v641
    %650 = vst [vmem:[#allocation2] sm:$0xff] %v647
    %651 = vst [vmem:[#allocation2 + $0x8] sm:$0xff] %v648
    %652 = vst [vmem:[#allocation2 + $0x10] sm:$0x3] %v649
    %v653 = vld [vmem:[#allocation2] ss:$2 sm:$0xff]
    %v654 = vld [vmem:[%s366] ss:$2 sm:$0x1]
    %v655 = vld [vmem:[%s370] ss:$2 sm:$0xff]
    %v656 = vld [vmem:[%s372] ss:$2 sm:$0x1]
    %659 = vrot.lane.b32.xlu0 %v653, 64
    %v660 = vpop.permute.xlu0 %659
    %661 = vrot.lane.b32.xlu0 %v654, 64
    %v662 = vpop.permute.xlu0 %661
    %v665 = vmax.f32 %v653, %v660
    %v666 = vmax.f32 %v654, %v662
    %669 = vrot.lane.b32.xlu0 %v655, 64
    %v670 = vpop.permute.xlu0 %669
    %671 = vrot.lane.b32.xlu0 %v656, 64
    %v672 = vpop.permute.xlu0 %671
    %v675 = vmax.f32 %v655, %v670
    %v676 = vmax.f32 %v656, %v672
    %v677 = vmax.f32 %v665, %v675
    %v678 = vmax.f32 %v666, %v676
    %v679 = vld [vmem:[%s4] sm:$0x1]
    %v681 = vperm.slane %v679, 0
    %v683 = vadd.f32 %v677, %v681
    %v684 = vadd.f32 %v678, %v681
    %v685 = vmax.f32 %v683, 0.0
    %v686 = vmax.f32 %v684, 0.0
    %687 = vst.msk [vmem:[#allocation4] sm:$0xff] %vm442, %v685
    %688 = vst.msk [vmem:[#allocation4 + $0x8] sm:$0x1] %vm440, %v686
    %v689 = vld [vmem:[#allocation4] ss:$5 sm:$0x3]
    %v690 = vpack.c.bf16 %v689, %v689
    %v691 = vld [vmem:[%s6] sm:$0xf]
    %v692 = vld [vmem:[%s6 + $0x4] sm:$0xf]
    %v693 = vld [vmem:[%s6 + $0x8] sm:$0xf]
    %v694 = vld [vmem:[%s6 + $0xc] sm:$0xf]
    %v695 = vld [vmem:[%s6 + $0x10] sm:$0xf]
    %v696 = vld [vmem:[%s6 + $0x14] sm:$0xf]
    %v697 = vld [vmem:[%s6 + $0x18] sm:$0xf]
    %v698 = vld [vmem:[%s6 + $0x1c] sm:$0xf]
    %s699 = scalar_lea.vmem [#allocation4], 1
    %v700 = vld [vmem:[%s699] ss:$5 sm:$0x3]
    %v701 = vpack.c.bf16 %v700, %v700
    %s702 = scalar_lea.vmem %s6, 32
    %v703 = vld [vmem:[%s702] sm:$0xf]
    %v704 = vld [vmem:[%s702 + $0x4] sm:$0xf]
    %v705 = vld [vmem:[%s702 + $0x8] sm:$0xf]
    %v706 = vld [vmem:[%s702 + $0xc] sm:$0xf]
    %v707 = vld [vmem:[%s702 + $0x10] sm:$0xf]
    %v708 = vld [vmem:[%s702 + $0x14] sm:$0xf]
    %v709 = vld [vmem:[%s702 + $0x18] sm:$0xf]
    %v710 = vld [vmem:[%s702 + $0x1c] sm:$0xf]
    %v719 = vunpack.c.l.b16 %v703
    %v720 = vunpack.c.l.b16 %v704
    %v721 = vunpack.c.l.b16 %v705
    %v722 = vunpack.c.l.b16 %v706
    %v723 = vunpack.c.l.b16 %v707
    %v724 = vunpack.c.l.b16 %v708
    %v725 = vunpack.c.l.b16 %v709
    %v726 = vunpack.c.l.b16 %v710
    %v727 = vpack.c.b16 %v720, %v719
    %v728 = vpack.c.b16 %v722, %v721
    %v729 = vpack.c.b16 %v724, %v723
    %v730 = vpack.c.b16 %v726, %v725
    %v736 = vsel %vm442, %v701, 0
    %738 = vmatpush.bf16.msra.mxu0 0
    %739 = vmatpush.bf16.msra.mxu0 0
    %740 = vmatpush.bf16.msra.mxu0 0
    %741 = vmatpush.bf16.msra.mxu0 0
    %742 = vmatpush.bf16.msra.mxu0 %v730
    %743 = vmatpush.bf16.msra.mxu0 %v729
    %744 = vmatpush.bf16.msra.mxu0 %v728
    %745 = vmatpush.bf16.msra.mxu0 %v727
    %746 = vmatmul.bf16.gmra.mxu0 %v736
    %v747 = vpop.f32.mrf.mxu0
    %v748 = vadd.f32 0.0, %v747
    %v749 = vpop.f32.mrf.mxu0
    %750 = vdwg.mxu0
    %v759 = vunpack.c.l.b16 %v691
    %v760 = vunpack.c.l.b16 %v692
    %v761 = vunpack.c.l.b16 %v693
    %v762 = vunpack.c.l.b16 %v694
    %v763 = vunpack.c.l.b16 %v695
    %v764 = vunpack.c.l.b16 %v696
    %v765 = vunpack.c.l.b16 %v697
    %v766 = vunpack.c.l.b16 %v698
    %v767 = vpack.c.b16 %v760, %v759
    %v768 = vpack.c.b16 %v762, %v761
    %v769 = vpack.c.b16 %v764, %v763
    %v770 = vpack.c.b16 %v766, %v765
    %v776 = vsel %vm442, %v690, 0
    %778 = vmatpush.bf16.msra.mxu0 0
    %779 = vmatpush.bf16.msra.mxu0 0
    %780 = vmatpush.bf16.msra.mxu0 0
    %781 = vmatpush.bf16.msra.mxu0 0
    %782 = vmatpush.bf16.msra.mxu0 %v770
    %783 = vmatpush.bf16.msra.mxu0 %v769
    %784 = vmatpush.bf16.msra.mxu0 %v768
    %785 = vmatpush.bf16.msra.mxu0 %v767
    %786 = vmatmul.bf16.gmra.mxu0 %v776
    %v787 = vpop.f32.mrf.mxu0
    %v788 = vadd.f32 %v748, %v787
    %v789 = vpop.f32.mrf.mxu0
    %790 = vdwg.mxu0
    %s791 = scalar_lea.vmem [#allocation4], 2
    %v792 = vld [vmem:[%s791] ss:$5 sm:$0x3]
    %v793 = vpack.c.bf16 %v792, %v792
    %s794 = scalar_lea.vmem %s6, 64
    %v795 = vld [vmem:[%s794] sm:$0xf]
    %v796 = vld [vmem:[%s794 + $0x4] sm:$0xf]
    %v797 = vld [vmem:[%s794 + $0x8] sm:$0xf]
    %v798 = vld [vmem:[%s794 + $0xc] sm:$0xf]
    %v799 = vld [vmem:[%s794 + $0x10] sm:$0xf]
    %v800 = vld [vmem:[%s794 + $0x14] sm:$0xf]
    %v801 = vld [vmem:[%s794 + $0x18] sm:$0xf]
    %v802 = vld [vmem:[%s794 + $0x1c] sm:$0xf]
    %v811 = vunpack.c.l.b16 %v795
    %v812 = vunpack.c.l.b16 %v796
    %v813 = vunpack.c.l.b16 %v797
    %v814 = vunpack.c.l.b16 %v798
    %v815 = vunpack.c.l.b16 %v799
    %v816 = vunpack.c.l.b16 %v800
    %v817 = vunpack.c.l.b16 %v801
    %v818 = vunpack.c.l.b16 %v802
    %v819 = vpack.c.b16 %v812, %v811
    %v820 = vpack.c.b16 %v814, %v813
    %v821 = vpack.c.b16 %v816, %v815
    %v822 = vpack.c.b16 %v818, %v817
    %v828 = vsel %vm442, %v793, 0
    %830 = vmatpush.bf16.msra.mxu0 0
    %831 = vmatpush.bf16.msra.mxu0 0
    %832 = vmatpush.bf16.msra.mxu0 0
    %833 = vmatpush.bf16.msra.mxu0 0
    %834 = vmatpush.bf16.msra.mxu0 %v822
    %835 = vmatpush.bf16.msra.mxu0 %v821
    %836 = vmatpush.bf16.msra.mxu0 %v820
    %837 = vmatpush.bf16.msra.mxu0 %v819
    %838 = vmatmul.bf16.gmra.mxu0 %v828
    %v839 = vpop.f32.mrf.mxu0
    %v840 = vadd.f32 0.0, %v839
    %v841 = vpop.f32.mrf.mxu0
    %842 = vdwg.mxu0
    %v843 = vadd.f32 %v788, %v840
    %s844 = scalar_lea.vmem [#allocation4], 3
    %v845 = vld [vmem:[%s844] ss:$5 sm:$0x3]
    %v846 = vpack.c.bf16 %v845, %v845
    %s847 = scalar_lea.vmem %s6, 96
    %v848 = vld [vmem:[%s847] sm:$0xf]
    %v849 = vld [vmem:[%s847 + $0x4] sm:$0xf]
    %v850 = vld [vmem:[%s847 + $0x8] sm:$0xf]
    %v851 = vld [vmem:[%s847 + $0xc] sm:$0xf]
    %v852 = vld [vmem:[%s847 + $0x10] sm:$0xf]
    %v853 = vld [vmem:[%s847 + $0x14] sm:$0xf]
    %v854 = vld [vmem:[%s847 + $0x18] sm:$0xf]
    %v855 = vld [vmem:[%s847 + $0x1c] sm:$0xf]
    %v864 = vunpack.c.l.b16 %v848
    %v865 = vunpack.c.l.b16 %v849
    %v866 = vunpack.c.l.b16 %v850
    %v867 = vunpack.c.l.b16 %v851
    %v868 = vunpack.c.l.b16 %v852
    %v869 = vunpack.c.l.b16 %v853
    %v870 = vunpack.c.l.b16 %v854
    %v871 = vunpack.c.l.b16 %v855
    %v872 = vpack.c.b16 %v865, %v864
    %v873 = vpack.c.b16 %v867, %v866
    %v874 = vpack.c.b16 %v869, %v868
    %v875 = vpack.c.b16 %v871, %v870
    %v881 = vsel %vm442, %v846, 0
    %883 = vmatpush.bf16.msra.mxu0 0
    %884 = vmatpush.bf16.msra.mxu0 0
    %885 = vmatpush.bf16.msra.mxu0 0
    %886 = vmatpush.bf16.msra.mxu0 0
    %887 = vmatpush.bf16.msra.mxu0 %v875
    %888 = vmatpush.bf16.msra.mxu0 %v874
    %889 = vmatpush.bf16.msra.mxu0 %v873
    %890 = vmatpush.bf16.msra.mxu0 %v872
    %891 = vmatmul.bf16.gmra.mxu0 %v881
    %v892 = vpop.f32.mrf.mxu0
    %v893 = vadd.f32 0.0, %v892
    %v894 = vpop.f32.mrf.mxu0
    %895 = vdwg.mxu0
    %v896 = vadd.f32 %v843, %v893
    %v897 = vld [vmem:[%s7] sm:$0x1]
    %v899 = vperm.slane %v897, 0
    %v901 = vadd.f32 %v896, %v899
    %v902 = vmax.f32 %v901, 0.0
    %v903 = vpack.c.bf16 %v902, %v902
    %v904 = vld [vmem:[%s8] sm:$0xf]
    %v905 = vld [vmem:[%s8 + $0x4] sm:$0xf]
    %v906 = vld [vmem:[%s8 + $0x8] sm:$0xf]
    %v907 = vld [vmem:[%s8 + $0xc] sm:$0xf]
    %v908 = vld [vmem:[%s9] sm:$0x1]
    %v910 = vperm.slane %v908, 0
    %v916 = vunpack.c.l.b16 %v904
    %v917 = vunpack.c.l.b16 %v905
    %v918 = vunpack.c.l.b16 %v906
    %v919 = vunpack.c.l.b16 %v907
    %v920 = vpack.c.b16 %v917, %v916
    %v921 = vpack.c.b16 %v919, %v918
    %vm924 = vcmask 261120
    %v926 = vsel %vm924, %v903, 0
    %928 = vmatpush.bf16.msra.mxu0 0
    %929 = vmatpush.bf16.msra.mxu0 0
    %930 = vmatpush.bf16.msra.mxu0 0
    %931 = vmatpush.bf16.msra.mxu0 0
    %932 = vmatpush.bf16.msra.mxu0 0
    %933 = vmatpush.bf16.msra.mxu0 0
    %934 = vmatpush.bf16.msra.mxu0 %v921
    %935 = vmatpush.bf16.msra.mxu0 %v920
    %936 = vmatmul.bf16.gmra.mxu0 %v926
    %v937 = vpop.f32.mrf.mxu0
    %v938 = vadd.f32 %v910, %v937
    %v939 = vpop.f32.mrf.mxu0
    %940 = vdwg.mxu0
    %v941 = vmax.f32 %v938, 0.0
    %v942 = vpack.c.bf16 %v941, %v941
    %v943 = vld [vmem:[%s10] sm:$0xf]
    %v944 = vld [vmem:[%s10 + $0x4] sm:$0xf]
    %v945 = vld [vmem:[%s10 + $0x8] sm:$0xf]
    %v946 = vld [vmem:[%s10 + $0xc] sm:$0xf]
    %v947 = vld [vmem:[%s11] sm:$0x1]
    %v949 = vperm.slane %v947, 0
    %v955 = vunpack.c.l.b16 %v943
    %v956 = vunpack.c.l.b16 %v944
    %v957 = vunpack.c.l.b16 %v945
    %v958 = vunpack.c.l.b16 %v946
    %v959 = vpack.c.b16 %v956, %v955
    %v960 = vpack.c.b16 %v958, %v957
    %v964 = vsel %vm924, %v942, 0
    %966 = vmatpush.bf16.msra.mxu0 0
    %967 = vmatpush.bf16.msra.mxu0 0
    %968 = vmatpush.bf16.msra.mxu0 0
    %969 = vmatpush.bf16.msra.mxu0 0
    %970 = vmatpush.bf16.msra.mxu0 0
    %971 = vmatpush.bf16.msra.mxu0 0
    %972 = vmatpush.bf16.msra.mxu0 %v960
    %973 = vmatpush.bf16.msra.mxu0 %v959
    %974 = vmatmul.bf16.gmra.mxu0 %v964
    %v975 = vpop.f32.mrf.mxu0
    %v976 = vadd.f32 %v949, %v975
    %v977 = vpop.f32.mrf.mxu0
    %978 = vdwg.mxu0
    %979 = vst [vmem:[#allocation5] sm:$0x3] %v976
    // Predicated region
    $region50: #{forward.1} parent=1 // pred_check
      _
    $region51: #{forward.1} parent=1 // pred_check_branch
      %981 = sbr.rel (0) target = $region53
    $region52: #{forward.1} parent=1 // pred_region
      %983 = vsyncadd [#allocation6], 0
      %s985 = sshll.u32 [#allocation5], 4
      %s986 = int_to_ptr.vmem [resolvable:$true] %s985
      %s987 = sshll.u32 %s12, 4
      %s988 = int_to_ptr.hbm [resolvable:$true] %s987
      %990 = dma.vmem_to_hbm [thread:$0]  %s986, 32, %s988, [#allocation6]
    $region53: #{forward.1} parent=1 // pred_fallthru
      _
    // Predicated region
    $region54: #{forward.1} parent=1 // pred_check
      _
    $region55: #{forward.1} parent=1 // pred_check_branch
      %992 = sbr.rel (0) target = $region57
    $region56: #{forward.1} parent=1 // pred_region
      %994 = dma.done [#allocation6], 32
    $region57: #{forward.1} parent=1 // pred_fallthru
      _
    %995 = vsyncpa [#allocation6], 1

</llo_original>
